<compile_context>
chip_gen: v5e
topology: v5e:2x2
jax: 0.10.0
libtpu: 0.0.40
codegen_flags: <defaults>
</compile_context>

<pallas_src>
from functools import partial

import jax
import jax.numpy as jnp
from jax.experimental import pallas as pl
from jax.experimental.pallas import tpu as pltpu


def _round_up(n, m):
    return ((n + m - 1) // m) * m


def _largest_divisor_leq(n, cap):
    return max(d for d in range(1, min(n, cap) + 1) if n % d == 0)


def _tcn_ode_kernel(h_ode, T, Tout, K, padding,
                    x_ref, wc_ref, bc_ref,
                    w1t_ref, b1_ref, w2t_ref, b2_ref,
                    wfct_ref, bfc_ref,
                    out_ref, xpad_ref, feat_ref):
    Bblk, _, Din = x_ref.shape
    Hp = wc_ref.shape[2]
    Tp_s = xpad_ref.shape[1]
    Tout_p = Tp_s - (K - 1)                 # 8-aligned conv row count (>= Tout)
    mdt = wc_ref.dtype                      # MXU input dtype (bf16 or f32)

    # --- in-kernel time padding of x (zero edges every step: megacore-safe) ---
    if padding > 0:
        xpad_ref[:, :padding, :] = jnp.zeros((Bblk, padding, Din), xpad_ref.dtype)
    if Tp_s - padding - T > 0:
        xpad_ref[:, padding + T:, :] = jnp.zeros(
            (Bblk, Tp_s - padding - T, Din), xpad_ref.dtype)
    xpad_ref[:, padding:padding + T, :] = x_ref[...]

    # --- TemporalBlock: Conv1d(k=K) + bias + ReLU, then mean over time --------
    # One flattened 2D dot per tap (M = csub * Tout_p rows), no weight bcast.
    csub = _largest_divisor_leq(Bblk, 16)
    inv_t = jnp.float32(1.0 / Tout)
    bc = bc_ref[...]                        # (1, Hp) f32, implicit broadcast
    for c in range(Bblk // csub):           # static
        c0 = c * csub
        acc = jnp.zeros((csub * Tout_p, Hp), jnp.float32)
        for k in range(K):                  # K static (=3)
            xk = xpad_ref[c0:c0 + csub, k:k + Tout_p, :]     # (csub, Tout_p, Din)
            acc = acc + jnp.dot(
                xk.reshape(csub * Tout_p, Din).astype(mdt), wc_ref[k],
                preferred_element_type=jnp.float32)
        conv = jnp.maximum(acc + bc, 0.0).reshape(csub, Tout_p, Hp)
        # torch.mean(x, dim=2): direct temporal reduction over the Tout real rows.
        feat_ref[c0:c0 + csub, :] = jnp.sum(conv[:, :Tout, :], axis=1) * inv_t

    # --- NeuralODEBlock (one RK4 3/8-rule step) + final classifier ------------
    w1t = w1t_ref[...]
    b1 = b1_ref[...]                        # (1, Hp): implicit sublane broadcast
    w2t = w2t_ref[...]
    b2 = b2_ref[...]
    wfct = wfct_ref[...]
    bfc = bfc_ref[...]
    dt = jnp.float32(h_ode)
    third = jnp.float32(1.0 / 3.0)

    def f(y):   # ODEF.net (t unused; Dropout == identity in eval mode)
        h1 = jnp.tanh(jnp.dot(y.astype(mdt), w1t,
                              preferred_element_type=jnp.float32) + b1)
        return jnp.dot(h1.astype(mdt), w2t,
                       preferred_element_type=jnp.float32) + b2

    rsub = _largest_divisor_leq(Bblk, 128)  # bound RK4 live set to <=128 rows
    for r in range(Bblk // rsub):           # static
        r0 = r * rsub
        y0 = feat_ref[r0:r0 + rsub, :]
        k1 = f(y0)
        k2 = f(y0 + dt * third * k1)
        k3 = f(y0 + dt * (k2 - third * k1))
        k4 = f(y0 + dt * (k1 - k2 + k3))
        y1 = y0 + dt * jnp.float32(0.125) * (k1 + 3.0 * (k2 + k3) + k4)
        out_ref[r0:r0 + rsub, :] = (
            jnp.dot(y1.astype(mdt), wfct, preferred_element_type=jnp.float32)
            + bfc).astype(out_ref.dtype)


def tcn_with_neural_ode(x, params, ode_integration_time, *,
                        kernel_size=3, padding=2,
                        batch_block=None,
                        matmul_dtype=jnp.bfloat16):
    """x: (B, T, input_dim) float32.  Returns (B, num_classes) float32.

    batch_block: rows per grid step (MXU M).  Default min(128, round_up(B, 8));
    ~128 suits v5e, 256 is recommended on v6e/v7x when B is large enough to
    keep >= 2 grid steps (both v7x TensorCores busy).
    matmul_dtype: dtype fed to the MXU (accumulation is always float32).
    """
    wc, bc, w1, b1, w2, b2, wfc, bfc = params
    B, T, Din = x.shape
    H, _, K = wc.shape
    assert K == kernel_size
    C = wfc.shape[0]

    Tout = T + 2 * padding - (K - 1)        # Conv1d output length (stride=1)
    Tout_p = _round_up(Tout, 8)             # sublane-aligned conv row count
    Tp_s = Tout_p + K - 1                   # padded-time scratch length
    Hp = _round_up(H, 128)                  # lane-dense hidden width
    Cp = _round_up(C, 128)                  # lane-dense class width

    if batch_block is None:
        batch_block = min(128, _round_up(B, 8))
    Bp = _round_up(B, batch_block)
    nb = Bp // batch_block
    if Bp != B:                             # only copies x if B % block != 0
        x = jnp.pad(x, ((0, Bp - B), (0, 0), (0, 0)))

    f32 = jnp.float32
    mdt = matmul_dtype

    # Resident weights / biases (pure layout plumbing; x streams unmodified).
    wc_t = jnp.pad(jnp.transpose(wc, (2, 1, 0)).astype(mdt),
                   ((0, 0), (0, 0), (0, Hp - H)))            # (K, Din, Hp)
    bc_p = jnp.pad(bc.astype(f32).reshape(1, H), ((0, 0), (0, Hp - H)))
    w1t = jnp.pad(w1.astype(mdt).T, ((0, Hp - H), (0, Hp - H)))
    b1p = jnp.pad(b1.astype(f32).reshape(1, H), ((0, 0), (0, Hp - H)))
    w2t = jnp.pad(w2.astype(mdt).T, ((0, Hp - H), (0, Hp - H)))
    b2p = jnp.pad(b2.astype(f32).reshape(1, H), ((0, 0), (0, Hp - H)))
    wfct = jnp.pad(wfc.astype(mdt).T, ((0, Hp - H), (0, Cp - C)))
    bfcp = jnp.pad(bfc.astype(f32).reshape(1, C), ((0, 0), (0, Cp - C)))

    kernel = partial(_tcn_ode_kernel, float(ode_integration_time),
                     T, Tout, K, padding)

    def _fixed(shape):
        n = len(shape)
        return pl.BlockSpec(shape, lambda b, n=n: (0,) * n)

    out = pl.pallas_call(
        kernel,
        out_shape=jax.ShapeDtypeStruct((Bp, Cp), jnp.float32),
        grid=(nb,),
        in_specs=[
            # streamed + double-buffered across the (parallel) batch grid:
            pl.BlockSpec((batch_block, T, Din), lambda b: (b, 0, 0)),
            # VMEM-resident weights / biases (constant index maps):
            _fixed((K, Din, Hp)),
            _fixed((1, Hp)),
            _fixed((Hp, Hp)), _fixed((1, Hp)),
            _fixed((Hp, Hp)), _fixed((1, Hp)),
            _fixed((Hp, Cp)), _fixed((1, Cp)),
        ],
        out_specs=pl.BlockSpec((batch_block, Cp), lambda b: (b, 0)),
        scratch_shapes=[
            pltpu.VMEM((batch_block, Tp_s, Din), jnp.float32),  # time-padded x
            pltpu.VMEM((batch_block, Hp), jnp.float32),         # pooled features
        ],
        compiler_params=pltpu.CompilerParams(
            dimension_semantics=("parallel",),      # shard grid over TCs (v7x)
            vmem_limit_bytes=32 * 1024 * 1024),
    )(x, wc_t, bc_p, w1t, b1p, w2t, b2p, wfct, bfcp)

    # Drop batch / lane padding (layout plumbing only).
    return out[:B, :C]


def _reference_forward(x, params, ode_integration_time, *, padding=2):
    """Pure-JAX float32 reference for the PyTorch module's forward pass."""
    wc, bc, w1, b1, w2, b2, wfc, bfc = params
    B, T, Din = x.shape
    H, _, K = wc.shape
    xp = jnp.pad(x, ((0, 0), (padding, padding), (0, 0)))
    Tout = T + 2 * padding - (K - 1)
    conv = jnp.zeros((B, Tout, H), jnp.float32)
    for k in range(K):
        conv = conv + jnp.einsum('btd,hd->bth', xp[:, k:k + Tout, :], wc[:, :, k])
    conv = jnp.maximum(conv + bc, 0.0)
    feat = jnp.mean(conv, axis=1)

    def f(y):
        return jnp.tanh(y @ w1.T + b1) @ w2.T + b2

    dt = ode_integration_time
    k1 = f(feat)
    k2 = f(feat + dt * k1 / 3.0)
    k3 = f(feat + dt * (k2 - k1 / 3.0))
    k4 = f(feat + dt * (k1 - k2 + k3))
    y1 = feat + dt * 0.125 * (k1 + 3.0 * (k2 + k3) + k4)
    return y1 @ wfc.T + bfc


if __name__ == "__main__":
    # Small shapes consistent with the module's forward.
    B, T, Din, H, C = 16, 8, 4, 32, 8
    ode_integration_time = 1.0

    key = jax.random.PRNGKey(0)
    ks = jax.random.split(key, 9)
    wc = 0.1 * jax.random.normal(ks[0], (H, Din, 3), jnp.float32)   # Conv1d weight
    bc = 0.1 * jax.random.normal(ks[1], (H,), jnp.float32)          # Conv1d bias
    w1 = 0.1 * jax.random.normal(ks[2], (H, H), jnp.float32)        # ODEF linear 1
    b1 = 0.1 * jax.random.normal(ks[3], (H,), jnp.float32)
    w2 = 0.1 * jax.random.normal(ks[4], (H, H), jnp.float32)        # ODEF linear 2
    b2 = 0.1 * jax.random.normal(ks[5], (H,), jnp.float32)
    wfc = 0.1 * jax.random.normal(ks[6], (C, H), jnp.float32)       # fc weight
    bfc = 0.1 * jax.random.normal(ks[7], (C,), jnp.float32)         # fc bias
    x = jax.random.normal(ks[8], (B, T, Din), jnp.float32)
    params = (wc, bc, w1, b1, w2, b2, wfc, bfc)

    ref = jax.block_until_ready(_reference_forward(x, params, ode_integration_time))

    # Run 1: two grid steps (exercises the parallel batch axis + scratch reuse),
    # default bf16 MXU inputs with f32 accumulation.
    out = jax.block_until_ready(
        tcn_with_neural_ode(x, params, ode_integration_time, batch_block=8))
    assert out.shape == (B, C) and out.dtype == jnp.float32
    assert float(jnp.max(jnp.abs(out - ref))) < 2e-2

    # Run 2: default batch tiling, float32 MXU inputs.
    out32 = jax.block_until_ready(
        tcn_with_neural_ode(x, params, ode_integration_time,
                            matmul_dtype=jnp.float32))
    assert out32.shape == (B, C)
    assert float(jnp.max(jnp.abs(out32 - ref))) < 2e-2

    print("KERNEL_OK")
</pallas_src>

<mosaic_0001>
module attributes {stable_mosaic.version = 11 : i64} {
  func.func @_tcn_ode_kernel(%arg0: i32, %arg1: memref<8x8x4xf32, #tpu.memory_space<vmem>>, %arg2: memref<3x4x128xbf16, #tpu.memory_space<vmem>>, %arg3: memref<1x128xf32, #tpu.memory_space<vmem>>, %arg4: memref<128x128xbf16, #tpu.memory_space<vmem>>, %arg5: memref<1x128xf32, #tpu.memory_space<vmem>>, %arg6: memref<128x128xbf16, #tpu.memory_space<vmem>>, %arg7: memref<1x128xf32, #tpu.memory_space<vmem>>, %arg8: memref<128x128xbf16, #tpu.memory_space<vmem>>, %arg9: memref<1x128xf32, #tpu.memory_space<vmem>>, %arg10: memref<8x128xf32, #tpu.memory_space<vmem>>, %arg11: memref<8x18x4xf32, #tpu.memory_space<vmem>>, %arg12: memref<8x128xf32, #tpu.memory_space<vmem>>) attributes {dimension_semantics = [#tpu.dimension_semantics<parallel>], iteration_bounds = array<i64: 2>, scalar_prefetch = 0 : i64, scratch_operands = 2 : i64, tpu.core_type = #tpu.core_type<tc>, window_params = [{transform_indices = @transform_0, window_bounds = array<i64: 8, 8, 4>}, {pipeline_mode = #tpu.pipeline_mode<synchronous>, transform_indices = @transform_1, window_bounds = array<i64: 3, 4, 128>}, {pipeline_mode = #tpu.pipeline_mode<synchronous>, transform_indices = @transform_2, window_bounds = array<i64: 1, 128>}, {pipeline_mode = #tpu.pipeline_mode<synchronous>, transform_indices = @transform_3, window_bounds = array<i64: 128, 128>}, {pipeline_mode = #tpu.pipeline_mode<synchronous>, transform_indices = @transform_4, window_bounds = array<i64: 1, 128>}, {pipeline_mode = #tpu.pipeline_mode<synchronous>, transform_indices = @transform_5, window_bounds = array<i64: 128, 128>}, {pipeline_mode = #tpu.pipeline_mode<synchronous>, transform_indices = @transform_6, window_bounds = array<i64: 1, 128>}, {pipeline_mode = #tpu.pipeline_mode<synchronous>, transform_indices = @transform_7, window_bounds = array<i64: 128, 128>}, {pipeline_mode = #tpu.pipeline_mode<synchronous>, transform_indices = @transform_8, window_bounds = array<i64: 1, 128>}, {transform_indices = @transform_9, window_bounds = array<i64: 8, 128>}]} {
    %cst = arith.constant 0.000000e+00 : f32
    %0 = vector.broadcast %cst : f32 to vector<8x2x4xf32>
    %c0 = arith.constant 0 : index
    %c0_0 = arith.constant 0 : index
    %c0_1 = arith.constant 0 : index
    %1 = vector.load %arg11[%c0, %c0_0, %c0_1] : memref<8x18x4xf32, #tpu.memory_space<vmem>>, vector<8x2x4xf32>
    tpu.vector_store %arg11[%c0, %c0_0, %c0_1], %0 {strides = array<i32>} : memref<8x18x4xf32, #tpu.memory_space<vmem>>, vector<8x2x4xf32>,
    %cst_2 = arith.constant 0.000000e+00 : f32
    %2 = vector.broadcast %cst_2 : f32 to vector<8x8x4xf32>
    %c0_3 = arith.constant 0 : index
    %c10 = arith.constant 10 : index
    %c0_4 = arith.constant 0 : index
    %3 = vector.load %arg11[%c0_3, %c10, %c0_4] : memref<8x18x4xf32, #tpu.memory_space<vmem>>, vector<8x8x4xf32>
    tpu.vector_store %arg11[%c0_3, %c10, %c0_4], %2 {strides = array<i32>} : memref<8x18x4xf32, #tpu.memory_space<vmem>>, vector<8x8x4xf32>,
    %c0_5 = arith.constant 0 : index
    %c0_6 = arith.constant 0 : index
    %c0_7 = arith.constant 0 : index
    %4 = vector.load %arg1[%c0_5, %c0_6, %c0_7] : memref<8x8x4xf32, #tpu.memory_space<vmem>>, vector<8x8x4xf32>
    %c0_8 = arith.constant 0 : index
    %c2 = arith.constant 2 : index
    %c0_9 = arith.constant 0 : index
    %5 = vector.load %arg11[%c0_8, %c2, %c0_9] : memref<8x18x4xf32, #tpu.memory_space<vmem>>, vector<8x8x4xf32>
    tpu.vector_store %arg11[%c0_8, %c2, %c0_9], %4 {strides = array<i32>} : memref<8x18x4xf32, #tpu.memory_space<vmem>>, vector<8x8x4xf32>,
    %c0_10 = arith.constant 0 : index
    %c0_11 = arith.constant 0 : index
    %6 = vector.load %arg3[%c0_10, %c0_11] : memref<1x128xf32, #tpu.memory_space<vmem>>, vector<1x128xf32>
    %cst_12 = arith.constant 0.000000e+00 : f32
    %7 = vector.broadcast %cst_12 : f32 to vector<128x128xf32>
    %c0_13 = arith.constant 0 : index
    %c0_14 = arith.constant 0 : index
    %c0_15 = arith.constant 0 : index
    %8 = vector.load %arg11[%c0_13, %c0_14, %c0_15] : memref<8x18x4xf32, #tpu.memory_space<vmem>>, vector<8x16x4xf32>
    %9 = vector.shape_cast %8 : vector<8x16x4xf32> to vector<128x4xf32>
    %10 = arith.truncf %9 : vector<128x4xf32> to vector<128x4xbf16>
    %c0_16 = arith.constant 0 : index
    %c0_17 = arith.constant 0 : index
    %c0_18 = arith.constant 0 : index
    %11 = vector.load %arg2[%c0_16, %c0_17, %c0_18] : memref<3x4x128xbf16, #tpu.memory_space<vmem>>, vector<1x4x128xbf16>
    %12 = vector.shape_cast %11 : vector<1x4x128xbf16> to vector<4x128xbf16>
    %cst_19 = arith.constant dense<0.000000e+00> : vector<128x128xf32>
    %13 = tpu.matmul %10, %12, %cst_19 {dimension_numbers = #tpu.dot_dimension_numbers<[1], [0], [0], [1], [0, 0, 1, 1], [], []>} : vector<128x4xbf16>, vector<4x128xbf16>, vector<128x128xf32> -> vector<128x128xf32>
    %14 = arith.addf %7, %13 : vector<128x128xf32>
    %c0_20 = arith.constant 0 : index
    %c1 = arith.constant 1 : index
    %c0_21 = arith.constant 0 : index
    %15 = vector.load %arg11[%c0_20, %c1, %c0_21] : memref<8x18x4xf32, #tpu.memory_space<vmem>>, vector<8x16x4xf32>
    %16 = vector.shape_cast %15 : vector<8x16x4xf32> to vector<128x4xf32>
    %17 = arith.truncf %16 : vector<128x4xf32> to vector<128x4xbf16>
    %c1_22 = arith.constant 1 : index
    %c0_23 = arith.constant 0 : index
    %c0_24 = arith.constant 0 : index
    %18 = vector.load %arg2[%c1_22, %c0_23, %c0_24] : memref<3x4x128xbf16, #tpu.memory_space<vmem>>, vector<1x4x128xbf16>
    %19 = vector.shape_cast %18 : vector<1x4x128xbf16> to vector<4x128xbf16>
    %cst_25 = arith.constant dense<0.000000e+00> : vector<128x128xf32>
    %20 = tpu.matmul %17, %19, %cst_25 {dimension_numbers = #tpu.dot_dimension_numbers<[1], [0], [0], [1], [0, 0, 1, 1], [], []>} : vector<128x4xbf16>, vector<4x128xbf16>, vector<128x128xf32> -> vector<128x128xf32>
    %21 = arith.addf %14, %20 : vector<128x128xf32>
    %c0_26 = arith.constant 0 : index
    %c2_27 = arith.constant 2 : index
    %c0_28 = arith.constant 0 : index
    %22 = vector.load %arg11[%c0_26, %c2_27, %c0_28] : memref<8x18x4xf32, #tpu.memory_space<vmem>>, vector<8x16x4xf32>
    %23 = vector.shape_cast %22 : vector<8x16x4xf32> to vector<128x4xf32>
    %24 = arith.truncf %23 : vector<128x4xf32> to vector<128x4xbf16>
    %c2_29 = arith.constant 2 : index
    %c0_30 = arith.constant 0 : index
    %c0_31 = arith.constant 0 : index
    %25 = vector.load %arg2[%c2_29, %c0_30, %c0_31] : memref<3x4x128xbf16, #tpu.memory_space<vmem>>, vector<1x4x128xbf16>
    %26 = vector.shape_cast %25 : vector<1x4x128xbf16> to vector<4x128xbf16>
    %cst_32 = arith.constant dense<0.000000e+00> : vector<128x128xf32>
    %27 = tpu.matmul %24, %26, %cst_32 {dimension_numbers = #tpu.dot_dimension_numbers<[1], [0], [0], [1], [0, 0, 1, 1], [], []>} : vector<128x4xbf16>, vector<4x128xbf16>, vector<128x128xf32> -> vector<128x128xf32>
    %28 = arith.addf %21, %27 : vector<128x128xf32>
    %29 = vector.broadcast %6 : vector<1x128xf32> to vector<128x128xf32>
    %30 = arith.addf %28, %29 : vector<128x128xf32>
    %cst_33 = arith.constant 0.000000e+00 : f32
    %31 = vector.broadcast %cst_33 : f32 to vector<128x128xf32>
    %32 = arith.maximumf %30, %31 : vector<128x128xf32>
    %33 = vector.shape_cast %32 : vector<128x128xf32> to vector<8x16x128xf32>
    %34 = vector.extract_strided_slice %33 {offsets = [0, 0, 0], sizes = [8, 10, 128], strides = [1, 1, 1]} : vector<8x16x128xf32> to vector<8x10x128xf32>
    %cst_34 = arith.constant dense<0.000000e+00> : vector<8x128xf32>
    %35 = vector.multi_reduction <add>, %34, %cst_34 [1] : vector<8x10x128xf32> to vector<8x128xf32>
    %cst_35 = arith.constant 1.000000e-01 : f32
    %36 = vector.broadcast %cst_35 : f32 to vector<8x128xf32>
    %37 = arith.mulf %35, %36 : vector<8x128xf32>
    %c0_36 = arith.constant 0 : index
    %c0_37 = arith.constant 0 : index
    %38 = vector.load %arg12[%c0_36, %c0_37] : memref<8x128xf32, #tpu.memory_space<vmem>>, vector<8x128xf32>
    tpu.vector_store %arg12[%c0_36, %c0_37], %37 {strides = array<i32>} : memref<8x128xf32, #tpu.memory_space<vmem>>, vector<8x128xf32>,
    %c0_38 = arith.constant 0 : index
    %c0_39 = arith.constant 0 : index
    %39 = vector.load %arg4[%c0_38, %c0_39] : memref<128x128xbf16, #tpu.memory_space<vmem>>, vector<128x128xbf16>
    %c0_40 = arith.constant 0 : index
    %c0_41 = arith.constant 0 : index
    %40 = vector.load %arg5[%c0_40, %c0_41] : memref<1x128xf32, #tpu.memory_space<vmem>>, vector<1x128xf32>
    %c0_42 = arith.constant 0 : index
    %c0_43 = arith.constant 0 : index
    %41 = vector.load %arg6[%c0_42, %c0_43] : memref<128x128xbf16, #tpu.memory_space<vmem>>, vector<128x128xbf16>
    %c0_44 = arith.constant 0 : index
    %c0_45 = arith.constant 0 : index
    %42 = vector.load %arg7[%c0_44, %c0_45] : memref<1x128xf32, #tpu.memory_space<vmem>>, vector<1x128xf32>
    %c0_46 = arith.constant 0 : index
    %c0_47 = arith.constant 0 : index
    %43 = vector.load %arg8[%c0_46, %c0_47] : memref<128x128xbf16, #tpu.memory_space<vmem>>, vector<128x128xbf16>
    %c0_48 = arith.constant 0 : index
    %c0_49 = arith.constant 0 : index
    %44 = vector.load %arg9[%c0_48, %c0_49] : memref<1x128xf32, #tpu.memory_space<vmem>>, vector<1x128xf32>
    %c0_50 = arith.constant 0 : index
    %c0_51 = arith.constant 0 : index
    %45 = vector.load %arg12[%c0_50, %c0_51] : memref<8x128xf32, #tpu.memory_space<vmem>>, vector<8x128xf32>
    %46 = arith.truncf %45 : vector<8x128xf32> to vector<8x128xbf16>
    %cst_52 = arith.constant dense<0.000000e+00> : vector<8x128xf32>
    %47 = tpu.matmul %46, %39, %cst_52 {dimension_numbers = #tpu.dot_dimension_numbers<[1], [0], [0], [1], [0, 0, 1, 1], [], []>} : vector<8x128xbf16>, vector<128x128xbf16>, vector<8x128xf32> -> vector<8x128xf32>
    %48 = vector.broadcast %40 : vector<1x128xf32> to vector<8x128xf32>
    %49 = arith.addf %47, %48 : vector<8x128xf32>
    %50 = math.tanh %49 : vector<8x128xf32>
    %51 = arith.truncf %50 : vector<8x128xf32> to vector<8x128xbf16>
    %cst_53 = arith.constant dense<0.000000e+00> : vector<8x128xf32>
    %52 = tpu.matmul %51, %41, %cst_53 {dimension_numbers = #tpu.dot_dimension_numbers<[1], [0], [0], [1], [0, 0, 1, 1], [], []>} : vector<8x128xbf16>, vector<128x128xbf16>, vector<8x128xf32> -> vector<8x128xf32>
    %53 = vector.broadcast %42 : vector<1x128xf32> to vector<8x128xf32>
    %54 = arith.addf %52, %53 : vector<8x128xf32>
    %cst_54 = arith.constant 1.000000e+00 : f32
    %cst_55 = arith.constant 0.333333343 : f32
    %55 = arith.mulf %cst_54, %cst_55 : f32
    %56 = vector.broadcast %55 : f32 to vector<8x128xf32>
    %57 = arith.mulf %56, %54 : vector<8x128xf32>
    %58 = arith.addf %45, %57 : vector<8x128xf32>
    %59 = arith.truncf %58 : vector<8x128xf32> to vector<8x128xbf16>
    %cst_56 = arith.constant dense<0.000000e+00> : vector<8x128xf32>
    %60 = tpu.matmul %59, %39, %cst_56 {dimension_numbers = #tpu.dot_dimension_numbers<[1], [0], [0], [1], [0, 0, 1, 1], [], []>} : vector<8x128xbf16>, vector<128x128xbf16>, vector<8x128xf32> -> vector<8x128xf32>
    %61 = vector.broadcast %40 : vector<1x128xf32> to vector<8x128xf32>
    %62 = arith.addf %60, %61 : vector<8x128xf32>
    %63 = math.tanh %62 : vector<8x128xf32>
    %64 = arith.truncf %63 : vector<8x128xf32> to vector<8x128xbf16>
    %cst_57 = arith.constant dense<0.000000e+00> : vector<8x128xf32>
    %65 = tpu.matmul %64, %41, %cst_57 {dimension_numbers = #tpu.dot_dimension_numbers<[1], [0], [0], [1], [0, 0, 1, 1], [], []>} : vector<8x128xbf16>, vector<128x128xbf16>, vector<8x128xf32> -> vector<8x128xf32>
    %66 = vector.broadcast %42 : vector<1x128xf32> to vector<8x128xf32>
    %67 = arith.addf %65, %66 : vector<8x128xf32>
    %cst_58 = arith.constant 0.333333343 : f32
    %68 = vector.broadcast %cst_58 : f32 to vector<8x128xf32>
    %69 = arith.mulf %68, %54 : vector<8x128xf32>
    %70 = arith.subf %67, %69 : vector<8x128xf32>
    %cst_59 = arith.constant 1.000000e+00 : f32
    %71 = vector.broadcast %cst_59 : f32 to vector<8x128xf32>
    %72 = arith.mulf %71, %70 : vector<8x128xf32>
    %73 = arith.addf %45, %72 : vector<8x128xf32>
    %74 = arith.truncf %73 : vector<8x128xf32> to vector<8x128xbf16>
    %cst_60 = arith.constant dense<0.000000e+00> : vector<8x128xf32>
    %75 = tpu.matmul %74, %39, %cst_60 {dimension_numbers = #tpu.dot_dimension_numbers<[1], [0], [0], [1], [0, 0, 1, 1], [], []>} : vector<8x128xbf16>, vector<128x128xbf16>, vector<8x128xf32> -> vector<8x128xf32>
    %76 = vector.broadcast %40 : vector<1x128xf32> to vector<8x128xf32>
    %77 = arith.addf %75, %76 : vector<8x128xf32>
    %78 = math.tanh %77 : vector<8x128xf32>
    %79 = arith.truncf %78 : vector<8x128xf32> to vector<8x128xbf16>
    %cst_61 = arith.constant dense<0.000000e+00> : vector<8x128xf32>
    %80 = tpu.matmul %79, %41, %cst_61 {dimension_numbers = #tpu.dot_dimension_numbers<[1], [0], [0], [1], [0, 0, 1, 1], [], []>} : vector<8x128xbf16>, vector<128x128xbf16>, vector<8x128xf32> -> vector<8x128xf32>
    %81 = vector.broadcast %42 : vector<1x128xf32> to vector<8x128xf32>
    %82 = arith.addf %80, %81 : vector<8x128xf32>
    %83 = arith.subf %54, %67 : vector<8x128xf32>
    %84 = arith.addf %83, %82 : vector<8x128xf32>
    %cst_62 = arith.constant 1.000000e+00 : f32
    %85 = vector.broadcast %cst_62 : f32 to vector<8x128xf32>
    %86 = arith.mulf %85, %84 : vector<8x128xf32>
    %87 = arith.addf %45, %86 : vector<8x128xf32>
    %88 = arith.truncf %87 : vector<8x128xf32> to vector<8x128xbf16>
    %cst_63 = arith.constant dense<0.000000e+00> : vector<8x128xf32>
    %89 = tpu.matmul %88, %39, %cst_63 {dimension_numbers = #tpu.dot_dimension_numbers<[1], [0], [0], [1], [0, 0, 1, 1], [], []>} : vector<8x128xbf16>, vector<128x128xbf16>, vector<8x128xf32> -> vector<8x128xf32>
    %90 = vector.broadcast %40 : vector<1x128xf32> to vector<8x128xf32>
    %91 = arith.addf %89, %90 : vector<8x128xf32>
    %92 = math.tanh %91 : vector<8x128xf32>
    %93 = arith.truncf %92 : vector<8x128xf32> to vector<8x128xbf16>
    %cst_64 = arith.constant dense<0.000000e+00> : vector<8x128xf32>
    %94 = tpu.matmul %93, %41, %cst_64 {dimension_numbers = #tpu.dot_dimension_numbers<[1], [0], [0], [1], [0, 0, 1, 1], [], []>} : vector<8x128xbf16>, vector<128x128xbf16>, vector<8x128xf32> -> vector<8x128xf32>
    %95 = vector.broadcast %42 : vector<1x128xf32> to vector<8x128xf32>
    %96 = arith.addf %94, %95 : vector<8x128xf32>
    %cst_65 = arith.constant 1.000000e+00 : f32
    %cst_66 = arith.constant 1.250000e-01 : f32
    %97 = arith.mulf %cst_65, %cst_66 : f32
    %98 = arith.addf %67, %82 : vector<8x128xf32>
    %cst_67 = arith.constant 3.000000e+00 : f32
    %99 = vector.broadcast %cst_67 : f32 to vector<8x128xf32>
    %100 = arith.mulf %99, %98 : vector<8x128xf32>
    %101 = arith.addf %54, %100 : vector<8x128xf32>
    %102 = arith.addf %101, %96 : vector<8x128xf32>
    %103 = vector.broadcast %97 : f32 to vector<8x128xf32>
    %104 = arith.mulf %103, %102 : vector<8x128xf32>
    %105 = arith.addf %45, %104 : vector<8x128xf32>
    %106 = arith.truncf %105 : vector<8x128xf32> to vector<8x128xbf16>
    %cst_68 = arith.constant dense<0.000000e+00> : vector<8x128xf32>
    %107 = tpu.matmul %106, %43, %cst_68 {dimension_numbers = #tpu.dot_dimension_numbers<[1], [0], [0], [1], [0, 0, 1, 1], [], []>} : vector<8x128xbf16>, vector<128x128xbf16>, vector<8x128xf32> -> vector<8x128xf32>
    %108 = vector.broadcast %44 : vector<1x128xf32> to vector<8x128xf32>
    %109 = arith.addf %107, %108 : vector<8x128xf32>
    %c0_69 = arith.constant 0 : index
    %c0_70 = arith.constant 0 : index
    %110 = vector.load %arg10[%c0_69, %c0_70] : memref<8x128xf32, #tpu.memory_space<vmem>>, vector<8x128xf32>
    tpu.vector_store %arg10[%c0_69, %c0_70], %109 {strides = array<i32>} : memref<8x128xf32, #tpu.memory_space<vmem>>, vector<8x128xf32>,
    return
  }
  func.func @transform_0(%arg0: i32) -> (i32, i32, i32) {
    %c0_i32 = arith.constant 0 : i32
    %c0_i32_0 = arith.constant 0 : i32
    %c0_i32_1 = arith.constant 0 : i32
    return %arg0, %c0_i32, %c0_i32_0 : i32, i32, i32
  }
  func.func @transform_1(%arg0: i32) -> (i32, i32, i32) {
    %c0_i32 = arith.constant 0 : i32
    %c0_i32_0 = arith.constant 0 : i32
    %c0_i32_1 = arith.constant 0 : i32
    %c0_i32_2 = arith.constant 0 : i32
    return %c0_i32, %c0_i32_0, %c0_i32_1 : i32, i32, i32
  }
  func.func @transform_2(%arg0: i32) -> (i32, i32) {
    %c0_i32 = arith.constant 0 : i32
    %c0_i32_0 = arith.constant 0 : i32
    %c0_i32_1 = arith.constant 0 : i32
    return %c0_i32, %c0_i32_0 : i32, i32
  }
  func.func @transform_3(%arg0: i32) -> (i32, i32) {
    %c0_i32 = arith.constant 0 : i32
    %c0_i32_0 = arith.constant 0 : i32
    %c0_i32_1 = arith.constant 0 : i32
    return %c0_i32, %c0_i32_0 : i32, i32
  }
  func.func @transform_4(%arg0: i32) -> (i32, i32) {
    %c0_i32 = arith.constant 0 : i32
    %c0_i32_0 = arith.constant 0 : i32
    %c0_i32_1 = arith.constant 0 : i32
    return %c0_i32, %c0_i32_0 : i32, i32
  }
  func.func @transform_5(%arg0: i32) -> (i32, i32) {
    %c0_i32 = arith.constant 0 : i32
    %c0_i32_0 = arith.constant 0 : i32
    %c0_i32_1 = arith.constant 0 : i32
    return %c0_i32, %c0_i32_0 : i32, i32
  }
  func.func @transform_6(%arg0: i32) -> (i32, i32) {
    %c0_i32 = arith.constant 0 : i32
    %c0_i32_0 = arith.constant 0 : i32
    %c0_i32_1 = arith.constant 0 : i32
    return %c0_i32, %c0_i32_0 : i32, i32
  }
  func.func @transform_7(%arg0: i32) -> (i32, i32) {
    %c0_i32 = arith.constant 0 : i32
    %c0_i32_0 = arith.constant 0 : i32
    %c0_i32_1 = arith.constant 0 : i32
    return %c0_i32, %c0_i32_0 : i32, i32
  }
  func.func @transform_8(%arg0: i32) -> (i32, i32) {
    %c0_i32 = arith.constant 0 : i32
    %c0_i32_0 = arith.constant 0 : i32
    %c0_i32_1 = arith.constant 0 : i32
    return %c0_i32, %c0_i32_0 : i32, i32
  }
  func.func @transform_9(%arg0: i32) -> (i32, i32) {
    %c0_i32 = arith.constant 0 : i32
    %c0_i32_0 = arith.constant 0 : i32
    return %arg0, %c0_i32 : i32, i32
  }
}

</mosaic_0001>

<llo_original>
// kernel: tpu_custom_call.1
$region0: #{tpu_custom_call.1}
  #allocation0 [shape = 'u32[]', space=smem, size = 0x4, offset = 0x4, fixed_abs, tag = 'smem constant byte address 0x4 - core index']
  #allocation1 [shape = 'u32[72,128]{1,0:T(1,128)}', space=vmem, size = 0x9000, scoped, tag = 'internal scratch']
  #allocation2 [shape = 'f32[8,18,4]{2,1,0:T(8,128)}', space=vmem, size = 0x18000, scoped, tag = 'scratch operand']
  #allocation3 [shape = 'f32[8,128]{1,0:T(8,128)}', space=vmem, size = 0x1000, scoped, tag = 'scratch operand']
  %s0 = inlined_call_operand.vmem [shape: f32[16,8,4], index: 0, kind: input, shape index: {}]
  %s1 = inlined_call_operand.vmem [shape: bf16[3,4,128], index: 1, kind: input, shape index: {}]
  %s2 = inlined_call_operand.vmem [shape: f32[1,128], index: 2, kind: input, shape index: {}]
  %s3 = inlined_call_operand.vmem [shape: bf16[128,128], index: 3, kind: input, shape index: {}]
  %s4 = inlined_call_operand.vmem [shape: f32[1,128], index: 4, kind: input, shape index: {}]
  %s5 = inlined_call_operand.vmem [shape: bf16[128,128], index: 5, kind: input, shape index: {}]
  %s6 = inlined_call_operand.vmem [shape: f32[1,128], index: 6, kind: input, shape index: {}]
  %s7 = inlined_call_operand.hbm [shape: bf16[128,128], index: 7, kind: input, shape index: {}]
  %s8 = inlined_call_operand.vmem [shape: f32[1,128], index: 8, kind: input, shape index: {}]
  %s9 = inlined_call_operand.hbm [shape: f32[16,128], index: 9, kind: output, shape index: {}]
  %s10 = sld [smem:[#allocation0]]
  $region73: #{tpu_custom_call.1} parent=0
    _
  %s12 = ssub.s32 1, %s10
  %s13 = scalar_select 0, %s12, %s10
  $region1: #{tpu_custom_call.1} parent=0
    #allocation4 [shape = 'u8[32768]{0}', space=vmem, size = 0x8000, scoped, tag = 'input window, operand 7, single buffered']
    #allocation5 [shape = 's32[2]{0}', space=sflag, size = 0x8, scoped, tag = 'scoped memory for tpu_custom_call.1']
    #allocation6 [shape = 's32[2]{0}', space=sflag, size = 0x8, scoped, tag = 'scoped memory for tpu_custom_call.1']
    #allocation7 [shape = 'u8[8192]{0}', space=vmem, size = 0x2000, scoped, tag = 'output window, operand 0']
    %14 = vsyncpa [#allocation5], 0
    %15 = vsyncpa [#allocation6], 0
    %s16 = scalar_lea.sflag [#allocation6], 1
    %17 = vsyncpa %s16, 0
    loop: start=0, step=1, limit=4
    $region2: #{tpu_custom_call.1} parent=1 // loop_pre_header
      _
    $region3: #{tpu_custom_call.1} parent=1 // loop_header
      %s19 = sphi 0, %s23
      %p20 = scmp.ge.s32.totalorder %s19, 4
      %s29 = sphi 0, %s31
      %s32 = sphi 0, %s29
      %s33 = sphi 0, %s32
      %s49 = sphi 0, %s33
      %s53 = sphi 0, %s53
      %s55 = sphi 0, %s53
      %s56 = sphi 0, %s55
      %s70 = sphi 0, %s56
      %s74 = sphi 0, %s74
      %s76 = sphi 0, %s74
      %s77 = sphi 0, %s76
      %s91 = sphi 0, %s77
      %s95 = sphi 0, %s95
      %s97 = sphi 0, %s95
      %s98 = sphi 0, %s97
      %s112 = sphi 0, %s98
      %s116 = sphi 0, %s116
      %s118 = sphi 0, %s116
      %s119 = sphi 0, %s118
      %s133 = sphi 0, %s119
      %s137 = sphi 0, %s137
      %s139 = sphi 0, %s137
      %s140 = sphi 0, %s139
      %s154 = sphi 0, %s140
      %s158 = sphi 0, %s158
      %s160 = sphi 0, %s158
      %s161 = sphi 0, %s160
      %s175 = sphi 0, %s161
      %s179 = sphi 0, %s179
      %s181 = sphi 0, %s179
      %s182 = sphi 0, %s181
      %s196 = sphi 0, %s182
      %s200 = sphi 0, %s200
      %s202 = sphi 0, %s200
      %s203 = sphi 0, %s202
      %s217 = sphi 0, %s203
      %s223 = sphi 0, %s225
      %s226 = sphi 0, %s223
      %s227 = sphi 0, %s226
      %s243 = sphi 0, %s227
    $region4: #{tpu_custom_call.1} parent=1 // loop_header_branch
      %22 = sbr.rel (%p20) target = $region8
    $region5: #{tpu_custom_call.1} parent=1 // loop_body
      %s24 = ssub.s32 %s19, 1
      %s25 = ssub.s32 %s19, 2
      %s26 = sadd.s32 %s19, 1
      %s27 = ssub.s32 %s19, %s26
      %p28 = scmp.eq.s32.totalorder %s27, 0
      %s30 = sadd.s32 %s29, 1
      %s31 = scalar_select %p28, %s29, %s30
      %p34 = pneg %p28
      %p35 = scmp.eq.s32.totalorder %s19, 1
      %p36 = por %p34, %p35
      %p37 = scmp.ne.s32.totalorder %s29, %s32
      %p38 = scmp.eq.s32.totalorder %s19, 0
      %p39 = por %p37, %p38
      %p40 = scmp.ne.s32.totalorder %s29, %s32
      %p41 = scmp.eq.s32.totalorder %s24, 1
      %p42 = por %p40, %p41
      %p43 = scmp.ne.s32.totalorder %s32, %s33
      %p44 = scmp.eq.s32.totalorder %s24, 0
      %p45 = por %p43, %p44
      %p46 = scmp.ne.s32.totalorder %s32, %s33
      %p47 = scmp.eq.s32.totalorder %s25, 1
      %p48 = por %p46, %p47
      %p50 = scmp.ne.s32.totalorder %s33, %s49
      %p51 = scmp.eq.s32.totalorder %s25, 0
      %p52 = por %p50, %p51
      %s54 = sadd.s32 %s53, 1
      %p57 = scmp.eq.s32.totalorder %s19, 1
      %p58 = scmp.ne.s32.totalorder %s53, %s55
      %p59 = scmp.eq.s32.totalorder %s19, 0
      %p60 = por %p58, %p59
      %p61 = scmp.ne.s32.totalorder %s53, %s55
      %p62 = scmp.eq.s32.totalorder %s24, 1
      %p63 = por %p61, %p62
      %p64 = scmp.ne.s32.totalorder %s55, %s56
      %p65 = scmp.eq.s32.totalorder %s24, 0
      %p66 = por %p64, %p65
      %p67 = scmp.ne.s32.totalorder %s55, %s56
      %p68 = scmp.eq.s32.totalorder %s25, 1
      %p69 = por %p67, %p68
      %p71 = scmp.ne.s32.totalorder %s56, %s70
      %p72 = scmp.eq.s32.totalorder %s25, 0
      %p73 = por %p71, %p72
      %s75 = sadd.s32 %s74, 1
      %p78 = scmp.eq.s32.totalorder %s19, 1
      %p79 = scmp.ne.s32.totalorder %s74, %s76
      %p80 = scmp.eq.s32.totalorder %s19, 0
      %p81 = por %p79, %p80
      %p82 = scmp.ne.s32.totalorder %s74, %s76
      %p83 = scmp.eq.s32.totalorder %s24, 1
      %p84 = por %p82, %p83
      %p85 = scmp.ne.s32.totalorder %s76, %s77
      %p86 = scmp.eq.s32.totalorder %s24, 0
      %p87 = por %p85, %p86
      %p88 = scmp.ne.s32.totalorder %s76, %s77
      %p89 = scmp.eq.s32.totalorder %s25, 1
      %p90 = por %p88, %p89
      %p92 = scmp.ne.s32.totalorder %s77, %s91
      %p93 = scmp.eq.s32.totalorder %s25, 0
      %p94 = por %p92, %p93
      %s96 = sadd.s32 %s95, 1
      %p99 = scmp.eq.s32.totalorder %s19, 1
      %p100 = scmp.ne.s32.totalorder %s95, %s97
      %p101 = scmp.eq.s32.totalorder %s19, 0
      %p102 = por %p100, %p101
      %p103 = scmp.ne.s32.totalorder %s95, %s97
      %p104 = scmp.eq.s32.totalorder %s24, 1
      %p105 = por %p103, %p104
      %p106 = scmp.ne.s32.totalorder %s97, %s98
      %p107 = scmp.eq.s32.totalorder %s24, 0
      %p108 = por %p106, %p107
      %p109 = scmp.ne.s32.totalorder %s97, %s98
      %p110 = scmp.eq.s32.totalorder %s25, 1
      %p111 = por %p109, %p110
      %p113 = scmp.ne.s32.totalorder %s98, %s112
      %p114 = scmp.eq.s32.totalorder %s25, 0
      %p115 = por %p113, %p114
      %s117 = sadd.s32 %s116, 1
      %p120 = scmp.eq.s32.totalorder %s19, 1
      %p121 = scmp.ne.s32.totalorder %s116, %s118
      %p122 = scmp.eq.s32.totalorder %s19, 0
      %p123 = por %p121, %p122
      %p124 = scmp.ne.s32.totalorder %s116, %s118
      %p125 = scmp.eq.s32.totalorder %s24, 1
      %p126 = por %p124, %p125
      %p127 = scmp.ne.s32.totalorder %s118, %s119
      %p128 = scmp.eq.s32.totalorder %s24, 0
      %p129 = por %p127, %p128
      %p130 = scmp.ne.s32.totalorder %s118, %s119
      %p131 = scmp.eq.s32.totalorder %s25, 1
      %p132 = por %p130, %p131
      %p134 = scmp.ne.s32.totalorder %s119, %s133
      %p135 = scmp.eq.s32.totalorder %s25, 0
      %p136 = por %p134, %p135
      %s138 = sadd.s32 %s137, 1
      %p141 = scmp.eq.s32.totalorder %s19, 1
      %p142 = scmp.ne.s32.totalorder %s137, %s139
      %p143 = scmp.eq.s32.totalorder %s19, 0
      %p144 = por %p142, %p143
      %p145 = scmp.ne.s32.totalorder %s137, %s139
      %p146 = scmp.eq.s32.totalorder %s24, 1
      %p147 = por %p145, %p146
      %p148 = scmp.ne.s32.totalorder %s139, %s140
      %p149 = scmp.eq.s32.totalorder %s24, 0
      %p150 = por %p148, %p149
      %p151 = scmp.ne.s32.totalorder %s139, %s140
      %p152 = scmp.eq.s32.totalorder %s25, 1
      %p153 = por %p151, %p152
      %p155 = scmp.ne.s32.totalorder %s140, %s154
      %p156 = scmp.eq.s32.totalorder %s25, 0
      %p157 = por %p155, %p156
      %s159 = sadd.s32 %s158, 1
      %p162 = scmp.eq.s32.totalorder %s19, 1
      %p163 = scmp.ne.s32.totalorder %s158, %s160
      %p164 = scmp.eq.s32.totalorder %s19, 0
      %p165 = por %p163, %p164
      %p166 = scmp.ne.s32.totalorder %s158, %s160
      %p167 = scmp.eq.s32.totalorder %s24, 1
      %p168 = por %p166, %p167
      %p169 = scmp.ne.s32.totalorder %s160, %s161
      %p170 = scmp.eq.s32.totalorder %s24, 0
      %p171 = por %p169, %p170
      %p172 = scmp.ne.s32.totalorder %s160, %s161
      %p173 = scmp.eq.s32.totalorder %s25, 1
      %p174 = por %p172, %p173
      %p176 = scmp.ne.s32.totalorder %s161, %s175
      %p177 = scmp.eq.s32.totalorder %s25, 0
      %p178 = por %p176, %p177
      %s180 = sadd.s32 %s179, 1
      %p183 = scmp.eq.s32.totalorder %s19, 1
      %p184 = scmp.ne.s32.totalorder %s179, %s181
      %p185 = scmp.eq.s32.totalorder %s19, 0
      %p186 = por %p184, %p185
      %p187 = scmp.ne.s32.totalorder %s179, %s181
      %p188 = scmp.eq.s32.totalorder %s24, 1
      %p189 = por %p187, %p188
      %p190 = scmp.ne.s32.totalorder %s181, %s182
      %p191 = scmp.eq.s32.totalorder %s24, 0
      %p192 = por %p190, %p191
      %p193 = scmp.ne.s32.totalorder %s181, %s182
      %p194 = scmp.eq.s32.totalorder %s25, 1
      %p195 = por %p193, %p194
      %p197 = scmp.ne.s32.totalorder %s182, %s196
      %p198 = scmp.eq.s32.totalorder %s25, 0
      %p199 = por %p197, %p198
      %s201 = sadd.s32 %s200, 1
      %p204 = scmp.eq.s32.totalorder %s19, 1
      %p205 = scmp.ne.s32.totalorder %s200, %s202
      %p206 = scmp.eq.s32.totalorder %s19, 0
      %p207 = por %p205, %p206
      %p208 = scmp.ne.s32.totalorder %s200, %s202
      %p209 = scmp.eq.s32.totalorder %s24, 1
      %p210 = por %p208, %p209
      %p211 = scmp.ne.s32.totalorder %s202, %s203
      %p212 = scmp.eq.s32.totalorder %s24, 0
      %p213 = por %p211, %p212
      %p214 = scmp.ne.s32.totalorder %s202, %s203
      %p215 = scmp.eq.s32.totalorder %s25, 1
      %p216 = por %p214, %p215
      %p218 = scmp.ne.s32.totalorder %s203, %s217
      %p219 = scmp.eq.s32.totalorder %s25, 0
      %p220 = por %p218, %p219
      %s221 = ssub.s32 %s19, %s26
      %p222 = scmp.eq.s32.totalorder %s221, 0
      %s224 = sadd.s32 %s223, 1
      %s225 = scalar_select %p222, %s223, %s224
      %p228 = pneg %p222
      %p229 = scmp.eq.s32.totalorder %s19, 1
      %p230 = por %p228, %p229
      %p231 = scmp.ne.s32.totalorder %s223, %s226
      %p232 = scmp.eq.s32.totalorder %s19, 0
      %p233 = por %p231, %p232
      %p234 = scmp.ne.s32.totalorder %s223, %s226
      %p235 = scmp.eq.s32.totalorder %s24, 1
      %p236 = por %p234, %p235
      %p237 = scmp.ne.s32.totalorder %s226, %s227
      %p238 = scmp.eq.s32.totalorder %s24, 0
      %p239 = por %p237, %p238
      %p240 = scmp.ne.s32.totalorder %s226, %s227
      %p241 = scmp.eq.s32.totalorder %s25, 1
      %p242 = por %p240, %p241
      %p244 = scmp.ne.s32.totalorder %s227, %s243
      %p245 = scmp.eq.s32.totalorder %s25, 0
      %p246 = por %p244, %p245
      %p247 = scmp.le.s32.totalorder 1, %s19
      %p248 = scmp.lt.s32.totalorder %s19, 3
      %p249 = pnand %p247, %p248
      %p250 = pneg %p249
      // Predicated region
      $region9: #{tpu_custom_call.1} parent=5 // pred_check
        _
      $region10: #{tpu_custom_call.1} parent=5 // pred_check_branch
        %252 = sbr.rel (%p249) target = $region12
      $region11: #{tpu_custom_call.1} parent=5 // pred_region
        %s253 = ssub.s32 %s19, 1
        // Predicated region
        $region13: #{tpu_custom_call.1} parent=11 // pred_check
          %p254 = pneg %p66
        $region14: #{tpu_custom_call.1} parent=11 // pred_check_branch
          %256 = sbr.rel (%p254) target = $region16
        $region15: #{tpu_custom_call.1} parent=11 // pred_region
          _
        $region16: #{tpu_custom_call.1} parent=11 // pred_fallthru
          _
        // Predicated region
        $region17: #{tpu_custom_call.1} parent=11 // pred_check
          %p257 = pneg %p87
        $region18: #{tpu_custom_call.1} parent=11 // pred_check_branch
          %259 = sbr.rel (%p257) target = $region20
        $region19: #{tpu_custom_call.1} parent=11 // pred_region
          _
        $region20: #{tpu_custom_call.1} parent=11 // pred_fallthru
          _
        // Predicated region
        $region21: #{tpu_custom_call.1} parent=11 // pred_check
          %p260 = pneg %p108
        $region22: #{tpu_custom_call.1} parent=11 // pred_check_branch
          %262 = sbr.rel (%p260) target = $region24
        $region23: #{tpu_custom_call.1} parent=11 // pred_region
          _
        $region24: #{tpu_custom_call.1} parent=11 // pred_fallthru
          _
        // Predicated region
        $region25: #{tpu_custom_call.1} parent=11 // pred_check
          %p263 = pneg %p129
        $region26: #{tpu_custom_call.1} parent=11 // pred_check_branch
          %265 = sbr.rel (%p263) target = $region28
        $region27: #{tpu_custom_call.1} parent=11 // pred_region
          _
        $region28: #{tpu_custom_call.1} parent=11 // pred_fallthru
          _
        // Predicated region
        $region29: #{tpu_custom_call.1} parent=11 // pred_check
          %p266 = pneg %p150
        $region30: #{tpu_custom_call.1} parent=11 // pred_check_branch
          %268 = sbr.rel (%p266) target = $region32
        $region31: #{tpu_custom_call.1} parent=11 // pred_region
          _
        $region32: #{tpu_custom_call.1} parent=11 // pred_fallthru
          _
        // Predicated region
        $region33: #{tpu_custom_call.1} parent=11 // pred_check
          %p269 = pneg %p171
        $region34: #{tpu_custom_call.1} parent=11 // pred_check_branch
          %271 = sbr.rel (%p269) target = $region36
        $region35: #{tpu_custom_call.1} parent=11 // pred_region
          _
        $region36: #{tpu_custom_call.1} parent=11 // pred_fallthru
          _
        // Predicated region
        $region37: #{tpu_custom_call.1} parent=11 // pred_check
          %p272 = pneg %p192
        $region38: #{tpu_custom_call.1} parent=11 // pred_check_branch
          %274 = sbr.rel (%p272) target = $region40
        $region39: #{tpu_custom_call.1} parent=11 // pred_region
          %276 = vsyncadd [#allocation5], 0
          %s277 = sshll.u32 %s7, 4
          %s278 = int_to_ptr.hbm [resolvable:$true] %s277
          %s279 = sshll.u32 [#allocation4], 4
          %s280 = int_to_ptr.vmem [resolvable:$true] %s279
          %285 = dma.hbm_to_vmem [thread:$0]  %s278, 1024, %s280, [#allocation5], 64, 64, 4
        $region40: #{tpu_custom_call.1} parent=11 // pred_fallthru
          _
        // Predicated region
        $region41: #{tpu_custom_call.1} parent=11 // pred_check
          %p286 = pneg %p213
        $region42: #{tpu_custom_call.1} parent=11 // pred_check_branch
          %288 = sbr.rel (%p286) target = $region44
        $region43: #{tpu_custom_call.1} parent=11 // pred_region
          _
        $region44: #{tpu_custom_call.1} parent=11 // pred_fallthru
          _
      $region12: #{tpu_custom_call.1} parent=5 // pred_fallthru
        _
      %p289 = scmp.lt.s32.totalorder %s19, 2
      // Predicated region
      $region45: #{tpu_custom_call.1} parent=5 // pred_check
        %p290 = pneg %p289
      $region46: #{tpu_custom_call.1} parent=5 // pred_check_branch
        %292 = sbr.rel (%p290) target = $region48
      $region47: #{tpu_custom_call.1} parent=5 // pred_region
        // Predicated region
        $region49: #{tpu_custom_call.1} parent=47 // pred_check
          %p293 = pneg %p39
        $region50: #{tpu_custom_call.1} parent=47 // pred_check_branch
          %295 = sbr.rel (%p293) target = $region52
        $region51: #{tpu_custom_call.1} parent=47 // pred_region
          %s296 = smul.u32 8, %s19
          %p297 = scmp.lt.s32.totalorder %s296, 15
          %s298 = scalar_select %p297, %s296, 15
          %s299 = smul.addr %s298, 8
          %s300 = scalar_lea.vmem %s0, %s299
          %s301 = smul.u32 8, %s19
        $region52: #{tpu_custom_call.1} parent=47 // pred_fallthru
          _
      $region48: #{tpu_custom_call.1} parent=5 // pred_fallthru
        _
      %p302 = scmp.le.s32.totalorder 1, %s19
      %p303 = scmp.lt.s32.totalorder %s19, 3
      %p304 = pnand %p302, %p303
      %p305 = pneg %p304
      // Predicated region
      $region53: #{tpu_custom_call.1} parent=5 // pred_check
        _
      $region54: #{tpu_custom_call.1} parent=5 // pred_check_branch
        %307 = sbr.rel (%p304) target = $region56
      $region55: #{tpu_custom_call.1} parent=5 // pred_region
        %s308 = ssub.s32 %s19, 1
        // Predicated region
        $region57: #{tpu_custom_call.1} parent=55 // pred_check
          %p309 = pneg %p192
        $region58: #{tpu_custom_call.1} parent=55 // pred_check_branch
          %311 = sbr.rel (%p309) target = $region60
        $region59: #{tpu_custom_call.1} parent=55 // pred_region
          %313 = dma.done [#allocation5], 1024
        $region60: #{tpu_custom_call.1} parent=55 // pred_fallthru
          _
        %s314 = smul.u32 8, %s24
        %p315 = scmp.lt.s32.totalorder %s314, 15
        %s316 = scalar_select %p315, %s314, 15
        %s317 = smul.addr %s316, 8
        %s318 = scalar_lea.vmem %s0, %s317
        %p319 = pneg %p45
        %p320 = pneg %p42
        %p321 = pneg %p66
        %p322 = pneg %p63
        %p323 = pneg %p87
        %p324 = pneg %p84
        %p325 = pneg %p108
        %p326 = pneg %p105
        %p327 = pneg %p129
        %p328 = pneg %p126
        %p329 = pneg %p150
        %p330 = pneg %p147
        %p331 = pneg %p171
        %p332 = pneg %p168
        %p333 = pneg %p192
        %p334 = pneg %p189
        %p335 = pneg %p213
        %p336 = pneg %p210
        %p337 = pneg %p239
        %p338 = pneg %p236
        %s339 = sand.u32 %s226, 1
        %s340 = scalar_lea.sflag [#allocation6], %s339
        %s341 = sand.u32 %s226, 1
        %s342 = smul.addr %s341, 8
        %s343 = scalar_lea.vmem [#allocation7], %s342
        %s344 = smul.u32 8, %s24
        %p345 = scmp.lt.s32.totalorder %s344, 15
        %s346 = scalar_select %p345, %s344, 15
        %s347 = smul.addr %s346, 8
        %s348 = scalar_lea.vmem %s0, %s347
        %s349 = smul.u32 8, %s24
        %vm351 = vcmask 25600
        %352 = vst.msk [vmem:[#allocation2] sm:$0x3] %vm351, 0.0
        %353 = vst.msk [vmem:[#allocation2 + $0x18] sm:$0x3] %vm351, 0.0
        %354 = vst.msk [vmem:[#allocation2 + $0x30] sm:$0x3] %vm351, 0.0
        %355 = vst.msk [vmem:[#allocation2 + $0x48] sm:$0x3] %vm351, 0.0
        %356 = vst.msk [vmem:[#allocation2 + $0x60] sm:$0x3] %vm351, 0.0
        %357 = vst.msk [vmem:[#allocation2 + $0x78] sm:$0x3] %vm351, 0.0
        %358 = vst.msk [vmem:[#allocation2 + $0x90] sm:$0x3] %vm351, 0.0
        %359 = vst.msk [vmem:[#allocation2 + $0xa8] sm:$0x3] %vm351, 0.0
        %vm360 = vcmask 31744
        %361 = vst.msk [vmem:[#allocation2 + $0xa] sm:$0xff] %vm360, 0.0
        %362 = vst.msk [vmem:[#allocation2 + $0x22] sm:$0xff] %vm360, 0.0
        %363 = vst.msk [vmem:[#allocation2 + $0x3a] sm:$0xff] %vm360, 0.0
        %364 = vst.msk [vmem:[#allocation2 + $0x52] sm:$0xff] %vm360, 0.0
        %365 = vst.msk [vmem:[#allocation2 + $0x6a] sm:$0xff] %vm360, 0.0
        %366 = vst.msk [vmem:[#allocation2 + $0x82] sm:$0xff] %vm360, 0.0
        %367 = vst.msk [vmem:[#allocation2 + $0x9a] sm:$0xff] %vm360, 0.0
        %368 = vst.msk [vmem:[#allocation2 + $0xb2] sm:$0xff] %vm360, 0.0
        %v369 = vld [vmem:[%s348] sm:$0xff]
        %v370 = vld [vmem:[%s348 + $0x8] sm:$0xff]
        %v371 = vld [vmem:[%s348 + $0x10] sm:$0xff]
        %v372 = vld [vmem:[%s348 + $0x18] sm:$0xff]
        %v373 = vld [vmem:[%s348 + $0x20] sm:$0xff]
        %v374 = vld [vmem:[%s348 + $0x28] sm:$0xff]
        %v375 = vld [vmem:[%s348 + $0x30] sm:$0xff]
        %v376 = vld [vmem:[%s348 + $0x38] sm:$0xff]
        %377 = vst.msk [vmem:[#allocation2 + $0x2] sm:$0xff] %vm360, %v369
        %378 = vst.msk [vmem:[#allocation2 + $0x1a] sm:$0xff] %vm360, %v370
        %379 = vst.msk [vmem:[#allocation2 + $0x32] sm:$0xff] %vm360, %v371
        %380 = vst.msk [vmem:[#allocation2 + $0x4a] sm:$0xff] %vm360, %v372
        %381 = vst.msk [vmem:[#allocation2 + $0x62] sm:$0xff] %vm360, %v373
        %382 = vst.msk [vmem:[#allocation2 + $0x7a] sm:$0xff] %vm360, %v374
        %383 = vst.msk [vmem:[#allocation2 + $0x92] sm:$0xff] %vm360, %v375
        %384 = vst.msk [vmem:[#allocation2 + $0xaa] sm:$0xff] %vm360, %v376
        %v385 = vld [vmem:[%s2] sm:$0x1]
        %v386 = vld [vmem:[#allocation2] sm:$0xff]
        %v387 = vld [vmem:[#allocation2 + $0x8] sm:$0xff]
        %v388 = vld [vmem:[#allocation2 + $0x18] sm:$0xff]
        %v389 = vld [vmem:[#allocation2 + $0x20] sm:$0xff]
        %v390 = vld [vmem:[#allocation2 + $0x30] sm:$0xff]
        %v391 = vld [vmem:[#allocation2 + $0x38] sm:$0xff]
        %v392 = vld [vmem:[#allocation2 + $0x48] sm:$0xff]
        %v393 = vld [vmem:[#allocation2 + $0x50] sm:$0xff]
        %v394 = vld [vmem:[#allocation2 + $0x60] sm:$0xff]
        %v395 = vld [vmem:[#allocation2 + $0x68] sm:$0xff]
        %v396 = vld [vmem:[#allocation2 + $0x78] sm:$0xff]
        %v397 = vld [vmem:[#allocation2 + $0x80] sm:$0xff]
        %v398 = vld [vmem:[#allocation2 + $0x90] sm:$0xff]
        %v399 = vld [vmem:[#allocation2 + $0x98] sm:$0xff]
        %v400 = vld [vmem:[#allocation2 + $0xa8] sm:$0xff]
        %v401 = vld [vmem:[#allocation2 + $0xb0] sm:$0xff]
        %v402 = vpack.c.bf16 %v387, %v386
        %v403 = vpack.c.bf16 %v389, %v388
        %v404 = vpack.c.bf16 %v391, %v390
        %v405 = vpack.c.bf16 %v393, %v392
        %v406 = vpack.c.bf16 %v395, %v394
        %v407 = vpack.c.bf16 %v397, %v396
        %v408 = vpack.c.bf16 %v399, %v398
        %v409 = vpack.c.bf16 %v401, %v400
        %v410 = vld [vmem:[%s1] sm:$0x3]
        %v411 = vld [vmem:[#allocation2 + $0x1] sm:$0xff]
        %v412 = vld [vmem:[#allocation2 + $0x9] sm:$0xff]
        %v413 = vld [vmem:[#allocation2 + $0x19] sm:$0xff]
        %v414 = vld [vmem:[#allocation2 + $0x21] sm:$0xff]
        %v415 = vld [vmem:[#allocation2 + $0x31] sm:$0xff]
        %v416 = vld [vmem:[#allocation2 + $0x39] sm:$0xff]
        %v417 = vld [vmem:[#allocation2 + $0x49] sm:$0xff]
        %v418 = vld [vmem:[#allocation2 + $0x51] sm:$0xff]
        %v419 = vld [vmem:[#allocation2 + $0x61] sm:$0xff]
        %v420 = vld [vmem:[#allocation2 + $0x69] sm:$0xff]
        %v421 = vld [vmem:[#allocation2 + $0x79] sm:$0xff]
        %v422 = vld [vmem:[#allocation2 + $0x81] sm:$0xff]
        %v423 = vld [vmem:[#allocation2 + $0x91] sm:$0xff]
        %v424 = vld [vmem:[#allocation2 + $0x99] sm:$0xff]
        %v425 = vld [vmem:[#allocation2 + $0xa9] sm:$0xff]
        %v426 = vld [vmem:[#allocation2 + $0xb1] sm:$0xff]
        %v427 = vpack.c.bf16 %v412, %v411
        %v428 = vpack.c.bf16 %v414, %v413
        %v429 = vpack.c.bf16 %v416, %v415
        %v430 = vpack.c.bf16 %v418, %v417
        %v431 = vpack.c.bf16 %v420, %v419
        %v432 = vpack.c.bf16 %v422, %v421
        %v433 = vpack.c.bf16 %v424, %v423
        %v434 = vpack.c.bf16 %v426, %v425
        %s435 = scalar_lea.vmem %s1, 2
        %v436 = vld [vmem:[%s435] sm:$0x3]
        %v438 = vsel %vm360, %v427, 0
        %v441 = vsel %vm360, %v428, 0
        %v444 = vsel %vm360, %v429, 0
        %v447 = vsel %vm360, %v430, 0
        %v450 = vsel %vm360, %v431, 0
        %v453 = vsel %vm360, %v432, 0
        %v456 = vsel %vm360, %v433, 0
        %v459 = vsel %vm360, %v434, 0
        %vm461 = vcmask 1041408
        %v463 = vsel %vm461, %v436, 0
        %465 = vmatpush.bf16.msra.mxu0 0
        %466 = vmatpush.bf16.msra.mxu0 0
        %467 = vmatpush.bf16.msra.mxu0 0
        %468 = vmatpush.bf16.msra.mxu0 0
        %469 = vmatpush.bf16.msra.mxu0 0
        %470 = vmatpush.bf16.msra.mxu0 0
        %471 = vmatpush.bf16.msra.mxu0 0
        %472 = vmatpush.bf16.msra.mxu0 %v463
        %473 = vmatmul.bf16.gmra.mxu0 %v438
        %v474 = vpop.f32.mrf.mxu0
        %v475 = vadd.f32 0.0, %v474
        %v476 = vpop.f32.mrf.mxu0
        %v477 = vadd.f32 0.0, %v476
        %478 = vmatmul.bf16.gmra.mxu0 %v441
        %v479 = vpop.f32.mrf.mxu0
        %v480 = vadd.f32 0.0, %v479
        %v481 = vpop.f32.mrf.mxu0
        %v482 = vadd.f32 0.0, %v481
        %483 = vmatmul.bf16.gmra.mxu0 %v444
        %v484 = vpop.f32.mrf.mxu0
        %v485 = vadd.f32 0.0, %v484
        %v486 = vpop.f32.mrf.mxu0
        %v487 = vadd.f32 0.0, %v486
        %488 = vmatmul.bf16.gmra.mxu0 %v447
        %v489 = vpop.f32.mrf.mxu0
        %v490 = vadd.f32 0.0, %v489
        %v491 = vpop.f32.mrf.mxu0
        %v492 = vadd.f32 0.0, %v491
        %493 = vmatmul.bf16.gmra.mxu0 %v450
        %v494 = vpop.f32.mrf.mxu0
        %v495 = vadd.f32 0.0, %v494
        %v496 = vpop.f32.mrf.mxu0
        %v497 = vadd.f32 0.0, %v496
        %498 = vmatmul.bf16.gmra.mxu0 %v453
        %v499 = vpop.f32.mrf.mxu0
        %v500 = vadd.f32 0.0, %v499
        %v501 = vpop.f32.mrf.mxu0
        %v502 = vadd.f32 0.0, %v501
        %503 = vmatmul.bf16.gmra.mxu0 %v456
        %v504 = vpop.f32.mrf.mxu0
        %v505 = vadd.f32 0.0, %v504
        %v506 = vpop.f32.mrf.mxu0
        %v507 = vadd.f32 0.0, %v506
        %508 = vmatmul.bf16.gmra.mxu0 %v459
        %v509 = vpop.f32.mrf.mxu0
        %v510 = vadd.f32 0.0, %v509
        %v511 = vpop.f32.mrf.mxu0
        %v512 = vadd.f32 0.0, %v511
        %513 = vdwg.mxu0
        %v515 = vsel %vm360, %v402, 0
        %v518 = vsel %vm360, %v403, 0
        %v521 = vsel %vm360, %v404, 0
        %v524 = vsel %vm360, %v405, 0
        %v527 = vsel %vm360, %v406, 0
        %v530 = vsel %vm360, %v407, 0
        %v533 = vsel %vm360, %v408, 0
        %v536 = vsel %vm360, %v409, 0
        %v539 = vsel %vm461, %v410, 0
        %541 = vmatpush.bf16.msra.mxu0 0
        %542 = vmatpush.bf16.msra.mxu0 0
        %543 = vmatpush.bf16.msra.mxu0 0
        %544 = vmatpush.bf16.msra.mxu0 0
        %545 = vmatpush.bf16.msra.mxu0 0
        %546 = vmatpush.bf16.msra.mxu0 0
        %547 = vmatpush.bf16.msra.mxu0 0
        %548 = vmatpush.bf16.msra.mxu0 %v539
        %549 = vmatmul.bf16.gmra.mxu0 %v515
        %v550 = vpop.f32.mrf.mxu0
        %v551 = vadd.f32 %v475, %v550
        %v552 = vpop.f32.mrf.mxu0
        %v553 = vadd.f32 %v477, %v552
        %554 = vmatmul.bf16.gmra.mxu0 %v518
        %v555 = vpop.f32.mrf.mxu0
        %v556 = vadd.f32 %v480, %v555
        %v557 = vpop.f32.mrf.mxu0
        %v558 = vadd.f32 %v482, %v557
        %559 = vmatmul.bf16.gmra.mxu0 %v521
        %v560 = vpop.f32.mrf.mxu0
        %v561 = vadd.f32 %v485, %v560
        %v562 = vpop.f32.mrf.mxu0
        %v563 = vadd.f32 %v487, %v562
        %564 = vmatmul.bf16.gmra.mxu0 %v524
        %v565 = vpop.f32.mrf.mxu0
        %v566 = vadd.f32 %v490, %v565
        %v567 = vpop.f32.mrf.mxu0
        %v568 = vadd.f32 %v492, %v567
        %569 = vmatmul.bf16.gmra.mxu0 %v527
        %v570 = vpop.f32.mrf.mxu0
        %v571 = vadd.f32 %v495, %v570
        %v572 = vpop.f32.mrf.mxu0
        %v573 = vadd.f32 %v497, %v572
        %574 = vmatmul.bf16.gmra.mxu0 %v530
        %v575 = vpop.f32.mrf.mxu0
        %v576 = vadd.f32 %v500, %v575
        %v577 = vpop.f32.mrf.mxu0
        %v578 = vadd.f32 %v502, %v577
        %579 = vmatmul.bf16.gmra.mxu0 %v533
        %v580 = vpop.f32.mrf.mxu0
        %v581 = vadd.f32 %v505, %v580
        %v582 = vpop.f32.mrf.mxu0
        %v583 = vadd.f32 %v507, %v582
        %584 = vmatmul.bf16.gmra.mxu0 %v536
        %v585 = vpop.f32.mrf.mxu0
        %v586 = vadd.f32 %v510, %v585
        %v587 = vpop.f32.mrf.mxu0
        %v588 = vadd.f32 %v512, %v587
        %589 = vdwg.mxu0
        %v590 = vld [vmem:[#allocation2 + $0x2] sm:$0xff]
        %v591 = vld [vmem:[#allocation2 + $0xa] sm:$0xff]
        %v592 = vld [vmem:[#allocation2 + $0x1a] sm:$0xff]
        %v593 = vld [vmem:[#allocation2 + $0x22] sm:$0xff]
        %v594 = vld [vmem:[#allocation2 + $0x32] sm:$0xff]
        %v595 = vld [vmem:[#allocation2 + $0x3a] sm:$0xff]
        %v596 = vld [vmem:[#allocation2 + $0x4a] sm:$0xff]
        %v597 = vld [vmem:[#allocation2 + $0x52] sm:$0xff]
        %v598 = vld [vmem:[#allocation2 + $0x62] sm:$0xff]
        %v599 = vld [vmem:[#allocation2 + $0x6a] sm:$0xff]
        %v600 = vld [vmem:[#allocation2 + $0x7a] sm:$0xff]
        %v601 = vld [vmem:[#allocation2 + $0x82] sm:$0xff]
        %v602 = vld [vmem:[#allocation2 + $0x92] sm:$0xff]
        %v603 = vld [vmem:[#allocation2 + $0x9a] sm:$0xff]
        %v604 = vld [vmem:[#allocation2 + $0xaa] sm:$0xff]
        %v605 = vld [vmem:[#allocation2 + $0xb2] sm:$0xff]
        %v606 = vpack.c.bf16 %v591, %v590
        %v607 = vpack.c.bf16 %v593, %v592
        %v608 = vpack.c.bf16 %v595, %v594
        %v609 = vpack.c.bf16 %v597, %v596
        %v610 = vpack.c.bf16 %v599, %v598
        %v611 = vpack.c.bf16 %v601, %v600
        %v612 = vpack.c.bf16 %v603, %v602
        %v613 = vpack.c.bf16 %v605, %v604
        %s614 = scalar_lea.vmem %s1, 4
        %v615 = vld [vmem:[%s614] sm:$0x3]
        %v617 = vsel %vm360, %v606, 0
        %v620 = vsel %vm360, %v607, 0
        %v623 = vsel %vm360, %v608, 0
        %v626 = vsel %vm360, %v609, 0
        %v629 = vsel %vm360, %v610, 0
        %v632 = vsel %vm360, %v611, 0
        %v635 = vsel %vm360, %v612, 0
        %v638 = vsel %vm360, %v613, 0
        %v641 = vsel %vm461, %v615, 0
        %643 = vmatpush.bf16.msra.mxu0 0
        %644 = vmatpush.bf16.msra.mxu0 0
        %645 = vmatpush.bf16.msra.mxu0 0
        %646 = vmatpush.bf16.msra.mxu0 0
        %647 = vmatpush.bf16.msra.mxu0 0
        %648 = vmatpush.bf16.msra.mxu0 0
        %649 = vmatpush.bf16.msra.mxu0 0
        %650 = vmatpush.bf16.msra.mxu0 %v641
        %651 = vmatmul.bf16.gmra.mxu0 %v617
        %v652 = vpop.f32.mrf.mxu0
        %v653 = vadd.f32 0.0, %v652
        %v654 = vpop.f32.mrf.mxu0
        %v655 = vadd.f32 0.0, %v654
        %656 = vmatmul.bf16.gmra.mxu0 %v620
        %v657 = vpop.f32.mrf.mxu0
        %v658 = vadd.f32 0.0, %v657
        %v659 = vpop.f32.mrf.mxu0
        %v660 = vadd.f32 0.0, %v659
        %661 = vmatmul.bf16.gmra.mxu0 %v623
        %v662 = vpop.f32.mrf.mxu0
        %v663 = vadd.f32 0.0, %v662
        %v664 = vpop.f32.mrf.mxu0
        %v665 = vadd.f32 0.0, %v664
        %666 = vmatmul.bf16.gmra.mxu0 %v626
        %v667 = vpop.f32.mrf.mxu0
        %v668 = vadd.f32 0.0, %v667
        %v669 = vpop.f32.mrf.mxu0
        %v670 = vadd.f32 0.0, %v669
        %671 = vmatmul.bf16.gmra.mxu0 %v629
        %v672 = vpop.f32.mrf.mxu0
        %v673 = vadd.f32 0.0, %v672
        %v674 = vpop.f32.mrf.mxu0
        %v675 = vadd.f32 0.0, %v674
        %676 = vmatmul.bf16.gmra.mxu0 %v632
        %v677 = vpop.f32.mrf.mxu0
        %v678 = vadd.f32 0.0, %v677
        %v679 = vpop.f32.mrf.mxu0
        %v680 = vadd.f32 0.0, %v679
        %681 = vmatmul.bf16.gmra.mxu0 %v635
        %v682 = vpop.f32.mrf.mxu0
        %v683 = vadd.f32 0.0, %v682
        %v684 = vpop.f32.mrf.mxu0
        %v685 = vadd.f32 0.0, %v684
        %686 = vmatmul.bf16.gmra.mxu0 %v638
        %v687 = vpop.f32.mrf.mxu0
        %v688 = vadd.f32 0.0, %v687
        %v689 = vpop.f32.mrf.mxu0
        %v690 = vadd.f32 0.0, %v689
        %691 = vdwg.mxu0
        %v692 = vadd.f32 %v551, %v653
        %v693 = vadd.f32 %v553, %v655
        %v694 = vadd.f32 %v556, %v658
        %v695 = vadd.f32 %v558, %v660
        %v696 = vadd.f32 %v561, %v663
        %v697 = vadd.f32 %v563, %v665
        %v698 = vadd.f32 %v566, %v668
        %v699 = vadd.f32 %v568, %v670
        %v700 = vadd.f32 %v571, %v673
        %v701 = vadd.f32 %v573, %v675
        %v702 = vadd.f32 %v576, %v678
        %v703 = vadd.f32 %v578, %v680
        %v704 = vadd.f32 %v581, %v683
        %v705 = vadd.f32 %v583, %v685
        %v706 = vadd.f32 %v586, %v688
        %v707 = vadd.f32 %v588, %v690
        %v709 = vperm.slane %v385, 0
        %v711 = vadd.f32 %v692, %v709
        %v712 = vadd.f32 %v693, %v709
        %v713 = vadd.f32 %v694, %v709
        %v714 = vadd.f32 %v695, %v709
        %v715 = vadd.f32 %v696, %v709
        %v716 = vadd.f32 %v697, %v709
        %v717 = vadd.f32 %v698, %v709
        %v718 = vadd.f32 %v699, %v709
        %v719 = vadd.f32 %v700, %v709
        %v720 = vadd.f32 %v701, %v709
        %v721 = vadd.f32 %v702, %v709
        %v722 = vadd.f32 %v703, %v709
        %v723 = vadd.f32 %v704, %v709
        %v724 = vadd.f32 %v705, %v709
        %v725 = vadd.f32 %v706, %v709
        %v726 = vadd.f32 %v707, %v709
        %v727 = vmax.f32 %v711, 0.0
        %v728 = vmax.f32 %v712, 0.0
        %v729 = vmax.f32 %v713, 0.0
        %v730 = vmax.f32 %v714, 0.0
        %v731 = vmax.f32 %v715, 0.0
        %v732 = vmax.f32 %v716, 0.0
        %v733 = vmax.f32 %v717, 0.0
        %v734 = vmax.f32 %v718, 0.0
        %v735 = vmax.f32 %v719, 0.0
        %v736 = vmax.f32 %v720, 0.0
        %v737 = vmax.f32 %v721, 0.0
        %v738 = vmax.f32 %v722, 0.0
        %v739 = vmax.f32 %v723, 0.0
        %v740 = vmax.f32 %v724, 0.0
        %v741 = vmax.f32 %v725, 0.0
        %v742 = vmax.f32 %v726, 0.0
        %v743 = vsel %vm461, %v728, 0.0
        %v744 = vadd.f32 %v727, %v743
        %v745 = vrot.slane %v744, 4
        %v746 = vadd.f32 %v744, %v745
        %v747 = vrot.slane %v746, 2
        %v748 = vadd.f32 %v746, %v747
        %v749 = vrot.slane %v748, 1
        %v750 = vadd.f32 %v748, %v749
        %v751 = vsel %vm461, %v730, 0.0
        %v752 = vadd.f32 %v729, %v751
        %v753 = vrot.slane %v752, 4
        %v754 = vadd.f32 %v752, %v753
        %v755 = vrot.slane %v754, 2
        %v756 = vadd.f32 %v754, %v755
        %v757 = vrot.slane %v756, 1
        %v758 = vadd.f32 %v756, %v757
        %v759 = vsel %vm461, %v732, 0.0
        %v760 = vadd.f32 %v731, %v759
        %v761 = vrot.slane %v760, 4
        %v762 = vadd.f32 %v760, %v761
        %v763 = vrot.slane %v762, 2
        %v764 = vadd.f32 %v762, %v763
        %v765 = vrot.slane %v764, 1
        %v766 = vadd.f32 %v764, %v765
        %v767 = vsel %vm461, %v734, 0.0
        %v768 = vadd.f32 %v733, %v767
        %v769 = vrot.slane %v768, 4
        %v770 = vadd.f32 %v768, %v769
        %v771 = vrot.slane %v770, 2
        %v772 = vadd.f32 %v770, %v771
        %v773 = vrot.slane %v772, 1
        %v774 = vadd.f32 %v772, %v773
        %v775 = vsel %vm461, %v736, 0.0
        %v776 = vadd.f32 %v735, %v775
        %v777 = vrot.slane %v776, 4
        %v778 = vadd.f32 %v776, %v777
        %v779 = vrot.slane %v778, 2
        %v780 = vadd.f32 %v778, %v779
        %v781 = vrot.slane %v780, 1
        %v782 = vadd.f32 %v780, %v781
        %v783 = vsel %vm461, %v738, 0.0
        %v784 = vadd.f32 %v737, %v783
        %v785 = vrot.slane %v784, 4
        %v786 = vadd.f32 %v784, %v785
        %v787 = vrot.slane %v786, 2
        %v788 = vadd.f32 %v786, %v787
        %v789 = vrot.slane %v788, 1
        %v790 = vadd.f32 %v788, %v789
        %v791 = vsel %vm461, %v740, 0.0
        %v792 = vadd.f32 %v739, %v791
        %v793 = vrot.slane %v792, 4
        %v794 = vadd.f32 %v792, %v793
        %v795 = vrot.slane %v794, 2
        %v796 = vadd.f32 %v794, %v795
        %v797 = vrot.slane %v796, 1
        %v798 = vadd.f32 %v796, %v797
        %v799 = vsel %vm461, %v742, 0.0
        %v800 = vadd.f32 %v741, %v799
        %v801 = vrot.slane %v800, 4
        %v802 = vadd.f32 %v800, %v801
        %v803 = vrot.slane %v802, 2
        %v804 = vadd.f32 %v802, %v803
        %v805 = vrot.slane %v804, 1
        %v806 = vadd.f32 %v804, %v805
        %v807 = vmul.f32 %v750, 0.1
        %v808 = vmul.f32 %v758, 0.1
        %v809 = vmul.f32 %v766, 0.1
        %v810 = vmul.f32 %v774, 0.1
        %v811 = vmul.f32 %v782, 0.1
        %v812 = vmul.f32 %v790, 0.1
        %v813 = vmul.f32 %v798, 0.1
        %v814 = vmul.f32 %v806, 0.1
        %vm823 = vcmask 1041409
        %v824 = vsel %vm823, %v808, %v807
        %vm825 = vcmask 1042434
        %v826 = vsel %vm825, %v809, %v824
        %vm827 = vcmask 1043459
        %v828 = vsel %vm827, %v810, %v826
        %vm829 = vcmask 1044484
        %v830 = vsel %vm829, %v811, %v828
        %vm831 = vcmask 1045509
        %v832 = vsel %vm831, %v812, %v830
        %vm833 = vcmask 1046534
        %v834 = vsel %vm833, %v813, %v832
        %vm835 = vcmask 1047559
        %v836 = vsel %vm835, %v814, %v834
        %838 = vst [vmem:[#allocation3] sm:$0xff] %v836
        %v839 = vld [vmem:[%s3] sm:$0xf]
        %v840 = vld [vmem:[%s3 + $0x4] sm:$0xf]
        %v841 = vld [vmem:[%s3 + $0x8] sm:$0xf]
        %v842 = vld [vmem:[%s3 + $0xc] sm:$0xf]
        %v843 = vld [vmem:[%s3 + $0x10] sm:$0xf]
        %v844 = vld [vmem:[%s3 + $0x14] sm:$0xf]
        %v845 = vld [vmem:[%s3 + $0x18] sm:$0xf]
        %v846 = vld [vmem:[%s3 + $0x1c] sm:$0xf]
        %v847 = vld [vmem:[%s3 + $0x20] sm:$0xf]
        %v848 = vld [vmem:[%s3 + $0x24] sm:$0xf]
        %v849 = vld [vmem:[%s3 + $0x28] sm:$0xf]
        %v850 = vld [vmem:[%s3 + $0x2c] sm:$0xf]
        %v851 = vld [vmem:[%s3 + $0x30] sm:$0xf]
        %v852 = vld [vmem:[%s3 + $0x34] sm:$0xf]
        %v853 = vld [vmem:[%s3 + $0x38] sm:$0xf]
        %v854 = vld [vmem:[%s3 + $0x3c] sm:$0xf]
        %v855 = vld [vmem:[%s4] sm:$0x1]
        %v856 = vld [vmem:[%s5] sm:$0xf]
        %v857 = vld [vmem:[%s5 + $0x4] sm:$0xf]
        %v858 = vld [vmem:[%s5 + $0x8] sm:$0xf]
        %v859 = vld [vmem:[%s5 + $0xc] sm:$0xf]
        %v860 = vld [vmem:[%s5 + $0x10] sm:$0xf]
        %v861 = vld [vmem:[%s5 + $0x14] sm:$0xf]
        %v862 = vld [vmem:[%s5 + $0x18] sm:$0xf]
        %v863 = vld [vmem:[%s5 + $0x1c] sm:$0xf]
        %v864 = vld [vmem:[%s5 + $0x20] sm:$0xf]
        %v865 = vld [vmem:[%s5 + $0x24] sm:$0xf]
        %v866 = vld [vmem:[%s5 + $0x28] sm:$0xf]
        %v867 = vld [vmem:[%s5 + $0x2c] sm:$0xf]
        %v868 = vld [vmem:[%s5 + $0x30] sm:$0xf]
        %v869 = vld [vmem:[%s5 + $0x34] sm:$0xf]
        %v870 = vld [vmem:[%s5 + $0x38] sm:$0xf]
        %v871 = vld [vmem:[%s5 + $0x3c] sm:$0xf]
        %v872 = vld [vmem:[%s6] sm:$0x1]
        %v873 = vld [vmem:[#allocation4] sm:$0xf]
        %v874 = vld [vmem:[#allocation4 + $0x4] sm:$0xf]
        %v875 = vld [vmem:[#allocation4 + $0x8] sm:$0xf]
        %v876 = vld [vmem:[#allocation4 + $0xc] sm:$0xf]
        %v877 = vld [vmem:[#allocation4 + $0x10] sm:$0xf]
        %v878 = vld [vmem:[#allocation4 + $0x14] sm:$0xf]
        %v879 = vld [vmem:[#allocation4 + $0x18] sm:$0xf]
        %v880 = vld [vmem:[#allocation4 + $0x1c] sm:$0xf]
        %v881 = vld [vmem:[#allocation4 + $0x20] sm:$0xf]
        %v882 = vld [vmem:[#allocation4 + $0x24] sm:$0xf]
        %v883 = vld [vmem:[#allocation4 + $0x28] sm:$0xf]
        %v884 = vld [vmem:[#allocation4 + $0x2c] sm:$0xf]
        %v885 = vld [vmem:[#allocation4 + $0x30] sm:$0xf]
        %v886 = vld [vmem:[#allocation4 + $0x34] sm:$0xf]
        %v887 = vld [vmem:[#allocation4 + $0x38] sm:$0xf]
        %v888 = vld [vmem:[#allocation4 + $0x3c] sm:$0xf]
        %v889 = vld [vmem:[%s8] sm:$0x1]
        %v890 = vld [vmem:[#allocation3] sm:$0xff]
        %v891 = vpack.c.bf16 %v890, %v890
        %v893 = vperm.slane %v855, 0
        %v911 = vunpack.c.l.b16 %v839
        %v912 = vunpack.c.l.b16 %v840
        %v913 = vunpack.c.l.b16 %v841
        %v914 = vunpack.c.l.b16 %v842
        %v915 = vunpack.c.l.b16 %v843
        %v916 = vunpack.c.l.b16 %v844
        %v917 = vunpack.c.l.b16 %v845
        %v918 = vunpack.c.l.b16 %v846
        %v919 = vunpack.c.l.b16 %v847
        %v920 = vunpack.c.l.b16 %v848
        %v921 = vunpack.c.l.b16 %v849
        %v922 = vunpack.c.l.b16 %v850
        %v923 = vunpack.c.l.b16 %v851
        %v924 = vunpack.c.l.b16 %v852
        %v925 = vunpack.c.l.b16 %v853
        %v926 = vunpack.c.l.b16 %v854
        %v927 = vpack.c.b16 %v912, %v911
        %v928 = vpack.c.b16 %v914, %v913
        %v929 = vpack.c.b16 %v916, %v915
        %v930 = vpack.c.b16 %v918, %v917
        %v931 = vpack.c.b16 %v920, %v919
        %v932 = vpack.c.b16 %v922, %v921
        %v933 = vpack.c.b16 %v924, %v923
        %v934 = vpack.c.b16 %v926, %v925
        %943 = vmatpush.bf16.msra.mxu0 %v934
        %944 = vmatpush.bf16.msra.mxu0 %v933
        %945 = vmatpush.bf16.msra.mxu0 %v932
        %946 = vmatpush.bf16.msra.mxu0 %v931
        %947 = vmatpush.bf16.msra.mxu0 %v930
        %948 = vmatpush.bf16.msra.mxu0 %v929
        %949 = vmatpush.bf16.msra.mxu0 %v928
        %950 = vmatpush.bf16.msra.mxu0 %v927
        %951 = vmatmul.bf16.gmra.mxu0 %v891
        %v952 = vpop.f32.mrf.mxu0
        %v953 = vadd.f32 %v893, %v952
        %v954 = vpop.f32.mrf.mxu0
        %955 = vdwg.mxu0
        %v956 = vtanh.pop %v953
        %v957 = vpack.c.bf16 %v956, %v956
        %v959 = vperm.slane %v872, 0
        %v977 = vunpack.c.l.b16 %v856
        %v978 = vunpack.c.l.b16 %v857
        %v979 = vunpack.c.l.b16 %v858
        %v980 = vunpack.c.l.b16 %v859
        %v981 = vunpack.c.l.b16 %v860
        %v982 = vunpack.c.l.b16 %v861
        %v983 = vunpack.c.l.b16 %v862
        %v984 = vunpack.c.l.b16 %v863
        %v985 = vunpack.c.l.b16 %v864
        %v986 = vunpack.c.l.b16 %v865
        %v987 = vunpack.c.l.b16 %v866
        %v988 = vunpack.c.l.b16 %v867
        %v989 = vunpack.c.l.b16 %v868
        %v990 = vunpack.c.l.b16 %v869
        %v991 = vunpack.c.l.b16 %v870
        %v992 = vunpack.c.l.b16 %v871
        %v993 = vpack.c.b16 %v978, %v977
        %v994 = vpack.c.b16 %v980, %v979
        %v995 = vpack.c.b16 %v982, %v981
        %v996 = vpack.c.b16 %v984, %v983
        %v997 = vpack.c.b16 %v986, %v985
        %v998 = vpack.c.b16 %v988, %v987
        %v999 = vpack.c.b16 %v990, %v989
        %v1000 = vpack.c.b16 %v992, %v991
        %1009 = vmatpush.bf16.msra.mxu0 %v1000
        %1010 = vmatpush.bf16.msra.mxu0 %v999
        %1011 = vmatpush.bf16.msra.mxu0 %v998
        %1012 = vmatpush.bf16.msra.mxu0 %v997
        %1013 = vmatpush.bf16.msra.mxu0 %v996
        %1014 = vmatpush.bf16.msra.mxu0 %v995
        %1015 = vmatpush.bf16.msra.mxu0 %v994
        %1016 = vmatpush.bf16.msra.mxu0 %v993
        %1017 = vmatmul.bf16.gmra.mxu0 %v957
        %v1018 = vpop.f32.mrf.mxu0
        %v1019 = vadd.f32 %v959, %v1018
        %v1020 = vpop.f32.mrf.mxu0
        %1021 = vdwg.mxu0
        %v1022 = vmul.f32 %v1019, 0.33333334
        %v1023 = vadd.f32 %v890, %v1022
        %v1024 = vpack.c.bf16 %v1023, %v1023
        %1025 = vmatpush.bf16.msra.mxu0 %v934
        %1026 = vmatpush.bf16.msra.mxu0 %v933
        %1027 = vmatpush.bf16.msra.mxu0 %v932
        %1028 = vmatpush.bf16.msra.mxu0 %v931
        %1029 = vmatpush.bf16.msra.mxu0 %v930
        %1030 = vmatpush.bf16.msra.mxu0 %v929
        %1031 = vmatpush.bf16.msra.mxu0 %v928
        %1032 = vmatpush.bf16.msra.mxu0 %v927
        %1033 = vmatmul.bf16.gmra.mxu0 %v1024
        %v1034 = vpop.f32.mrf.mxu0
        %v1035 = vadd.f32 %v893, %v1034
        %v1036 = vpop.f32.mrf.mxu0
        %1037 = vdwg.mxu0
        %v1038 = vtanh.pop %v1035
        %v1039 = vpack.c.bf16 %v1038, %v1038
        %1040 = vmatpush.bf16.msra.mxu0 %v1000
        %1041 = vmatpush.bf16.msra.mxu0 %v999
        %1042 = vmatpush.bf16.msra.mxu0 %v998
        %1043 = vmatpush.bf16.msra.mxu0 %v997
        %1044 = vmatpush.bf16.msra.mxu0 %v996
        %1045 = vmatpush.bf16.msra.mxu0 %v995
        %1046 = vmatpush.bf16.msra.mxu0 %v994
        %1047 = vmatpush.bf16.msra.mxu0 %v993
        %1048 = vmatmul.bf16.gmra.mxu0 %v1039
        %v1049 = vpop.f32.mrf.mxu0
        %v1050 = vadd.f32 %v959, %v1049
        %v1051 = vpop.f32.mrf.mxu0
        %1052 = vdwg.mxu0
        %v1053 = vsub.f32 %v1050, %v1022
        %v1054 = vadd.f32 %v890, %v1053
        %v1055 = vpack.c.bf16 %v1054, %v1054
        %1056 = vmatpush.bf16.msra.mxu0 %v934
        %1057 = vmatpush.bf16.msra.mxu0 %v933
        %1058 = vmatpush.bf16.msra.mxu0 %v932
        %1059 = vmatpush.bf16.msra.mxu0 %v931
        %1060 = vmatpush.bf16.msra.mxu0 %v930
        %1061 = vmatpush.bf16.msra.mxu0 %v929
        %1062 = vmatpush.bf16.msra.mxu0 %v928
        %1063 = vmatpush.bf16.msra.mxu0 %v927
        %1064 = vmatmul.bf16.gmra.mxu0 %v1055
        %v1065 = vpop.f32.mrf.mxu0
        %v1066 = vadd.f32 %v893, %v1065
        %v1067 = vpop.f32.mrf.mxu0
        %1068 = vdwg.mxu0
        %v1069 = vtanh.pop %v1066
        %v1070 = vpack.c.bf16 %v1069, %v1069
        %1071 = vmatpush.bf16.msra.mxu0 %v1000
        %1072 = vmatpush.bf16.msra.mxu0 %v999
        %1073 = vmatpush.bf16.msra.mxu0 %v998
        %1074 = vmatpush.bf16.msra.mxu0 %v997
        %1075 = vmatpush.bf16.msra.mxu0 %v996
        %1076 = vmatpush.bf16.msra.mxu0 %v995
        %1077 = vmatpush.bf16.msra.mxu0 %v994
        %1078 = vmatpush.bf16.msra.mxu0 %v993
        %1079 = vmatmul.bf16.gmra.mxu0 %v1070
        %v1080 = vpop.f32.mrf.mxu0
        %v1081 = vadd.f32 %v959, %v1080
        %v1082 = vpop.f32.mrf.mxu0
        %1083 = vdwg.mxu0
        %v1084 = vsub.f32 %v1019, %v1050
        %v1085 = vadd.f32 %v1084, %v1081
        %v1086 = vadd.f32 %v890, %v1085
        %v1087 = vpack.c.bf16 %v1086, %v1086
        %1088 = vmatpush.bf16.msra.mxu0 %v934
        %1089 = vmatpush.bf16.msra.mxu0 %v933
        %1090 = vmatpush.bf16.msra.mxu0 %v932
        %1091 = vmatpush.bf16.msra.mxu0 %v931
        %1092 = vmatpush.bf16.msra.mxu0 %v930
        %1093 = vmatpush.bf16.msra.mxu0 %v929
        %1094 = vmatpush.bf16.msra.mxu0 %v928
        %1095 = vmatpush.bf16.msra.mxu0 %v927
        %1096 = vmatmul.bf16.gmra.mxu0 %v1087
        %v1097 = vpop.f32.mrf.mxu0
        %v1098 = vadd.f32 %v893, %v1097
        %v1099 = vpop.f32.mrf.mxu0
        %1100 = vdwg.mxu0
        %v1101 = vtanh.pop %v1098
        %v1102 = vpack.c.bf16 %v1101, %v1101
        %1103 = vmatpush.bf16.msra.mxu0 %v1000
        %1104 = vmatpush.bf16.msra.mxu0 %v999
        %1105 = vmatpush.bf16.msra.mxu0 %v998
        %1106 = vmatpush.bf16.msra.mxu0 %v997
        %1107 = vmatpush.bf16.msra.mxu0 %v996
        %1108 = vmatpush.bf16.msra.mxu0 %v995
        %1109 = vmatpush.bf16.msra.mxu0 %v994
        %1110 = vmatpush.bf16.msra.mxu0 %v993
        %1111 = vmatmul.bf16.gmra.mxu0 %v1102
        %v1112 = vpop.f32.mrf.mxu0
        %v1113 = vadd.f32 %v959, %v1112
        %v1114 = vpop.f32.mrf.mxu0
        %1115 = vdwg.mxu0
        %v1116 = vadd.f32 %v1050, %v1081
        %v1117 = vmul.f32 %v1116, 3.0
        %v1118 = vadd.f32 %v1019, %v1117
        %v1119 = vadd.f32 %v1118, %v1113
        %v1120 = vmul.f32 %v1119, 0.125
        %v1121 = vadd.f32 %v890, %v1120
        %v1122 = vpack.c.bf16 %v1121, %v1121
        %v1124 = vperm.slane %v889, 0
        %v1142 = vunpack.c.l.b16 %v873
        %v1143 = vunpack.c.l.b16 %v874
        %v1144 = vunpack.c.l.b16 %v875
        %v1145 = vunpack.c.l.b16 %v876
        %v1146 = vunpack.c.l.b16 %v877
        %v1147 = vunpack.c.l.b16 %v878
        %v1148 = vunpack.c.l.b16 %v879
        %v1149 = vunpack.c.l.b16 %v880
        %v1150 = vunpack.c.l.b16 %v881
        %v1151 = vunpack.c.l.b16 %v882
        %v1152 = vunpack.c.l.b16 %v883
        %v1153 = vunpack.c.l.b16 %v884
        %v1154 = vunpack.c.l.b16 %v885
        %v1155 = vunpack.c.l.b16 %v886
        %v1156 = vunpack.c.l.b16 %v887
        %v1157 = vunpack.c.l.b16 %v888
        %v1158 = vpack.c.b16 %v1143, %v1142
        %v1159 = vpack.c.b16 %v1145, %v1144
        %v1160 = vpack.c.b16 %v1147, %v1146
        %v1161 = vpack.c.b16 %v1149, %v1148
        %v1162 = vpack.c.b16 %v1151, %v1150
        %v1163 = vpack.c.b16 %v1153, %v1152
        %v1164 = vpack.c.b16 %v1155, %v1154
        %v1165 = vpack.c.b16 %v1157, %v1156
        %1174 = vmatpush.bf16.msra.mxu0 %v1165
        %1175 = vmatpush.bf16.msra.mxu0 %v1164
        %1176 = vmatpush.bf16.msra.mxu0 %v1163
        %1177 = vmatpush.bf16.msra.mxu0 %v1162
        %1178 = vmatpush.bf16.msra.mxu0 %v1161
        %1179 = vmatpush.bf16.msra.mxu0 %v1160
        %1180 = vmatpush.bf16.msra.mxu0 %v1159
        %1181 = vmatpush.bf16.msra.mxu0 %v1158
        %1182 = vmatmul.bf16.gmra.mxu0 %v1122
        %v1183 = vpop.f32.mrf.mxu0
        %v1184 = vadd.f32 %v1124, %v1183
        %v1185 = vpop.f32.mrf.mxu0
        %1186 = vdwg.mxu0
        %1187 = vst [vmem:[%s343] sm:$0xff] %v1184
        %s1188 = sand.u32 %s226, 1
        %s1189 = scalar_lea.sflag [#allocation6], %s1188
        %s1190 = sand.u32 %s226, 1
        %s1191 = smul.addr %s1190, 8
        %s1192 = scalar_lea.vmem [#allocation7], %s1191
        // Predicated region
        $region61: #{tpu_custom_call.1} parent=55 // pred_check
          %p1193 = pneg %p236
        $region62: #{tpu_custom_call.1} parent=55 // pred_check_branch
          %1195 = sbr.rel (%p1193) target = $region64
        $region63: #{tpu_custom_call.1} parent=55 // pred_region
          %1197 = vsyncadd %s1189, 0
          %s1198 = smul.addr %s24, 8
          %s1199 = scalar_lea.hbm %s9, %s1198
          %s1201 = sshll.u32 %s1192, 4
          %s1202 = int_to_ptr.vmem [resolvable:$true] %s1201
          %s1203 = sshll.u32 %s1199, 4
          %s1204 = int_to_ptr.hbm [resolvable:$true] %s1203
          %1206 = dma.vmem_to_hbm [thread:$0]  %s1202, 128, %s1204, %s1189
        $region64: #{tpu_custom_call.1} parent=55 // pred_fallthru
          _
      $region56: #{tpu_custom_call.1} parent=5 // pred_fallthru
        _
      %p1207 = scmp.le.s32.totalorder 2, %s19
      // Predicated region
      $region65: #{tpu_custom_call.1} parent=5 // pred_check
        %p1208 = pneg %p1207
      $region66: #{tpu_custom_call.1} parent=5 // pred_check_branch
        %1210 = sbr.rel (%p1208) target = $region68
      $region67: #{tpu_custom_call.1} parent=5 // pred_region
        %s1211 = ssub.s32 %s19, 2
        // Predicated region
        $region69: #{tpu_custom_call.1} parent=67 // pred_check
          %p1212 = pneg %p242
        $region70: #{tpu_custom_call.1} parent=67 // pred_check_branch
          %1214 = sbr.rel (%p1212) target = $region72
        $region71: #{tpu_custom_call.1} parent=67 // pred_region
          %s1215 = sand.u32 %s227, 1
          %s1216 = scalar_lea.sflag [#allocation6], %s1215
          %s1217 = sand.u32 %s227, 1
          %s1218 = smul.addr %s1217, 8
          %s1219 = scalar_lea.vmem [#allocation7], %s1218
          %1221 = dma.done %s1216, 128
        $region72: #{tpu_custom_call.1} parent=67 // pred_fallthru
          _
      $region68: #{tpu_custom_call.1} parent=5 // pred_fallthru
        _
    $region6: #{tpu_custom_call.1} parent=1 // loop_footer
      %s23 = sadd.s32 1, %s19
    $region7: #{tpu_custom_call.1} parent=1 // loop_footer_branch
      %18 = sbr.rel target = $region3
    $region8: #{tpu_custom_call.1} parent=1 // loop_exit
      _
    %1222 = vsyncpa [#allocation5], 1
    %s1223 = scalar_lea.sflag [#allocation5], 1
    %1224 = vsyncpa %s1223, 1
    %1225 = vsyncpa [#allocation6], 1
    %s1226 = scalar_lea.sflag [#allocation6], 1
    %1227 = vsyncpa %s1226, 1

</llo_original>
